<compile_context>
chip_gen: v7x
topology: tpu7x:2x2x1
jax: 0.10.0
libtpu: 0.0.40
codegen_flags: <defaults>
</compile_context>

<pallas_src>
import jax
import jax.numpy as jnp
from jax import lax
from jax.experimental import pallas as pl
from jax.experimental.pallas import tpu as pltpu

C_IN = 63          # EEG channels
D_MODEL = 64       # tsai TransformerModel default d_model
D_FFN = 128        # tsai TransformerModel default dim_feedforward
C_OUT = 128        # TransformerModel output features
LN_EPS = 1e-5
QKV_PAD = 128      # lane stride of each q/k/v block inside the fused qkv weight
NUM_VEC_ROWS = 16  # packed bias/LayerNorm table rows (15 used, padded to 16)
NC_PAD = 128       # classifier logits padded to a full lane tile (unmasked stores)


def _layernorm(x, gamma, beta):
    mu = jnp.mean(x, axis=-1, keepdims=True)
    var = jnp.mean((x - mu) ** 2, axis=-1, keepdims=True)
    return (x - mu) * lax.rsqrt(var + LN_EPS) * gamma + beta


# ----------------------------------------------------------------------------
# Fused forward kernel: one batch tile per grid step.
# ----------------------------------------------------------------------------
def _tfm_fused_kernel(x_ref, w_in_ref, w_qkv_ref, w_o_ref, w_f1_ref, w_f2_ref,
                      w_out_ref, w_fc_ref, vec_ref, o_ref):
    f32, bf16 = jnp.float32, jnp.bfloat16
    bb, seq, _ = x_ref.shape
    m = bb * seq

    # Packed bias / LayerNorm table (one row per vector, zero-padded to 128 lanes).
    in_b = vec_ref[0:1, 0:D_MODEL]
    bq = vec_ref[1:2, 0:D_MODEL]
    bk = vec_ref[2:3, 0:D_MODEL]
    bv = vec_ref[3:4, 0:D_MODEL]
    bo = vec_ref[4:5, 0:D_MODEL]
    ln1g = vec_ref[5:6, 0:D_MODEL]
    ln1b = vec_ref[6:7, 0:D_MODEL]
    f1b = vec_ref[7:8, 0:D_FFN]
    f2b = vec_ref[8:9, 0:D_MODEL]
    ln2g = vec_ref[9:10, 0:D_MODEL]
    ln2b = vec_ref[10:11, 0:D_MODEL]
    lnfg = vec_ref[11:12, 0:D_MODEL]
    lnfb = vec_ref[12:13, 0:D_MODEL]
    out_b = vec_ref[13:14, 0:C_OUT]
    fc_b = vec_ref[14:15, :]                                  # full 128-lane row (zero-padded)

    def mm(a, w_ref):  # bf16 MXU matmul, f32 accumulation
        return jnp.dot(a.astype(bf16), w_ref[...], preferred_element_type=f32)

    # ---- inlinear (63->64 zero-padded K) + ReLU -----------------------------
    x2 = x_ref[...].reshape(m, D_MODEL)                       # (M, 64) f32
    h = jnp.maximum(mm(x2, w_in_ref) + in_b, 0.0)             # (M, 64) f32

    # ---- single-head self-attention (fused QKV projection) ------------------
    qkv = mm(h, w_qkv_ref)                                    # (M, 384)
    q = (qkv[:, 0:D_MODEL] + bq).reshape(bb, seq, D_MODEL)
    k = (qkv[:, QKV_PAD:QKV_PAD + D_MODEL] + bk).reshape(bb, seq, D_MODEL)
    v = (qkv[:, 2 * QKV_PAD:2 * QKV_PAD + D_MODEL] + bv).reshape(bb, seq, D_MODEL)

    s = jnp.einsum('bqd,bkd->bqk', q.astype(bf16), k.astype(bf16),
                   preferred_element_type=f32) * 0.125        # 1/sqrt(64)
    s = s - jnp.max(s, axis=-1, keepdims=True)
    p = jnp.exp(s)
    p = p * pl.reciprocal(jnp.sum(p, axis=-1, keepdims=True), approx=True)
    attn = jnp.einsum('bqk,bkd->bqd', p.astype(bf16), v.astype(bf16),
                      preferred_element_type=f32).reshape(m, D_MODEL)
    attn = mm(attn, w_o_ref) + bo

    # residual + LayerNorm1 (post-norm)
    y = _layernorm(h + attn, ln1g, ln1b)

    # ---- feed-forward --------------------------------------------------------
    ff = jnp.maximum(mm(y, w_f1_ref) + f1b, 0.0)              # (M, 128)
    ff = mm(ff, w_f2_ref) + f2b                               # (M, 64)
    y = _layernorm(y + ff, ln2g, ln2b)

    # final encoder LayerNorm (TransformerEncoder(norm=LayerNorm(d_model)))
    y = _layernorm(y, lnfg, lnfb)

    # ---- max over seq + ReLU + outlinear + fc (lane-dense 128-wide logits) ---
    pooled = jnp.maximum(jnp.max(y.reshape(bb, seq, D_MODEL), axis=1), 0.0)  # (bb,64)
    feat = mm(pooled, w_out_ref) + out_b                      # (bb, 128)
    o_ref[...] = (mm(feat, w_fc_ref) + fc_b).astype(o_ref.dtype)


# ----------------------------------------------------------------------------
# Wrapper
# ----------------------------------------------------------------------------
def tfm_model_forward(x, kp):
    """x: (bs, 63, seq_len) f32 in PyTorch NCL layout. kp: prepare_kernel_params(...)."""
    bs, c, seq = x.shape
    assert c == C_IN
    nc = kp["num_classes"]

    # NCL -> NLC permute fused with the 63->64 channel zero-pad: one small XLA copy.
    xt = jnp.pad(jnp.transpose(x, (0, 2, 1)), ((0, 0), (0, 0), (0, D_MODEL - C_IN)))

    bb = bs if bs < 8 else 8                  # batch tile (keeps scores/FFN small)
    bs_pad = ((bs + bb - 1) // bb) * bb
    if bs_pad != bs:
        xt = jnp.pad(xt, ((0, bs_pad - bs), (0, 0), (0, 0)))

    full = lambda shape: pl.BlockSpec(shape, lambda i: (0,) * len(shape))

    logits = pl.pallas_call(
        _tfm_fused_kernel,
        out_shape=jax.ShapeDtypeStruct((bs_pad, NC_PAD), jnp.float32),
        grid=(bs_pad // bb,),
        in_specs=[
            pl.BlockSpec((bb, seq, D_MODEL), lambda i: (i, 0, 0)),  # activations
            full((D_MODEL, D_MODEL)),        # w_in (row-padded 63->64)
            full((D_MODEL, 3 * QKV_PAD)),    # fused q|k|v weights (128-aligned blocks)
            full((D_MODEL, D_MODEL)),        # attention out-proj
            full((D_MODEL, D_FFN)),          # FFN w1
            full((D_FFN, D_MODEL)),          # FFN w2
            full((D_MODEL, C_OUT)),          # outlinear
            full((C_OUT, NC_PAD)),           # classifier fc (lane-padded to 128)
            full((NUM_VEC_ROWS, 128)),       # packed biases / LayerNorm params
        ],
        out_specs=pl.BlockSpec((bb, NC_PAD), lambda i: (i, 0)),
        compiler_params=pltpu.CompilerParams(
            dimension_semantics=("parallel",),   # batch tiles shard over v7x's 2 TCs
            vmem_limit_bytes=32 * 1024 * 1024,
        ),
    )(xt, kp["w_in"], kp["w_qkv"], kp["w_o"], kp["w_f1"], kp["w_f2"],
      kp["w_out"], kp["w_fc"], kp["vecs"])
    return logits[:bs, :nc]


def prepare_kernel_params(p):
    """Pack logical params into the fused-kernel operand layout (done once).

    NOTE: weights here are stored (in_features, out_features), i.e. the transpose of
    torch.nn.Linear / MultiheadAttention in_proj_weight which store (out, in); a
    checkpoint loader must transpose accordingly or results will be silently wrong.
    """
    f32, bf16 = jnp.float32, jnp.bfloat16
    nc = p["fc_w"].shape[1]
    w_in = jnp.zeros((D_MODEL, D_MODEL), f32).at[:C_IN, :].set(p["in_w"])
    w_qkv = (jnp.zeros((D_MODEL, 3 * QKV_PAD), f32)
             .at[:, 0:D_MODEL].set(p["wq"])
             .at[:, QKV_PAD:QKV_PAD + D_MODEL].set(p["wk"])
             .at[:, 2 * QKV_PAD:2 * QKV_PAD + D_MODEL].set(p["wv"]))
    w_fc = jnp.zeros((C_OUT, NC_PAD), f32).at[:, :nc].set(p["fc_w"])
    vec_rows = ["in_b", "bq", "bk", "bv", "bo", "ln1_g", "ln1_b", "ffn_b1",
                "ffn_b2", "ln2_g", "ln2_b", "lnf_g", "lnf_b", "out_b", "fc_b"]
    vecs = jnp.zeros((NUM_VEC_ROWS, 128), f32)
    for i, name in enumerate(vec_rows):
        v = p[name].astype(f32)
        vecs = vecs.at[i, :v.shape[0]].set(v)
    return {
        "w_in": w_in.astype(bf16),
        "w_qkv": w_qkv.astype(bf16),
        "w_o": p["wo"].astype(bf16),
        "w_f1": p["ffn_w1"].astype(bf16),
        "w_f2": p["ffn_w2"].astype(bf16),
        "w_out": p["out_w"].astype(bf16),
        "w_fc": w_fc.astype(bf16),
        "vecs": vecs,
        "num_classes": nc,
    }


def init_params(key, num_classes):
    ks = jax.random.split(key, 12)
    w = lambda k, shape: jax.random.normal(k, shape, jnp.float32) * 0.05
    z = lambda n: jnp.zeros((n,), jnp.float32)
    o = lambda n: jnp.ones((n,), jnp.float32)
    return {
        # TransformerModel.inlinear
        "in_w": w(ks[0], (C_IN, D_MODEL)), "in_b": z(D_MODEL),
        # MultiheadAttention (nhead=1): in_proj split into q/k/v + out_proj
        "wq": w(ks[1], (D_MODEL, D_MODEL)), "bq": z(D_MODEL),
        "wk": w(ks[2], (D_MODEL, D_MODEL)), "bk": z(D_MODEL),
        "wv": w(ks[3], (D_MODEL, D_MODEL)), "bv": z(D_MODEL),
        "wo": w(ks[4], (D_MODEL, D_MODEL)), "bo": z(D_MODEL),
        # encoder layer norms
        "ln1_g": o(D_MODEL), "ln1_b": z(D_MODEL),
        "ln2_g": o(D_MODEL), "ln2_b": z(D_MODEL),
        # feed-forward
        "ffn_w1": w(ks[5], (D_MODEL, D_FFN)), "ffn_b1": z(D_FFN),
        "ffn_w2": w(ks[6], (D_FFN, D_MODEL)), "ffn_b2": z(D_MODEL),
        # TransformerEncoder final norm
        "lnf_g": o(D_MODEL), "lnf_b": z(D_MODEL),
        # TransformerModel.outlinear
        "out_w": w(ks[7], (D_MODEL, C_OUT)), "out_b": z(C_OUT),
        # TfmModel.fc
        "fc_w": w(ks[8], (C_OUT, num_classes)), "fc_b": z(num_classes),
    }


if __name__ == "__main__":
    key = jax.random.PRNGKey(0)
    pkey, xkey = jax.random.split(key)

    num_classes = 4
    bs, seq = 2, 16
    params = init_params(pkey, num_classes)
    kp = prepare_kernel_params(params)   # packed once; baked in as jit constants

    x = jax.random.normal(xkey, (bs, C_IN, seq), jnp.float32)

    fwd = jax.jit(lambda xx: tfm_model_forward(xx, kp))
    out = fwd(x)
    jax.block_until_ready(out)

    assert out.shape == (bs, num_classes), out.shape
    assert bool(jnp.all(jnp.isfinite(out)))
    print("KERNEL_OK")
</pallas_src>

<mosaic_0001>
module attributes {stable_mosaic.version = 11 : i64} {
  func.func @_tfm_fused_kernel(%arg0: i32, %arg1: memref<2x16x64xf32, #tpu.memory_space<vmem>>, %arg2: memref<64x64xbf16, #tpu.memory_space<vmem>>, %arg3: memref<64x384xbf16, #tpu.memory_space<vmem>>, %arg4: memref<64x64xbf16, #tpu.memory_space<vmem>>, %arg5: memref<64x128xbf16, #tpu.memory_space<vmem>>, %arg6: memref<128x64xbf16, #tpu.memory_space<vmem>>, %arg7: memref<64x128xbf16, #tpu.memory_space<vmem>>, %arg8: memref<128x128xbf16, #tpu.memory_space<vmem>>, %arg9: memref<16x128xf32, #tpu.memory_space<vmem>>, %arg10: memref<2x128xf32, #tpu.memory_space<vmem>>) attributes {dimension_semantics = [#tpu.dimension_semantics<parallel>], iteration_bounds = array<i64: 1>, scalar_prefetch = 0 : i64, scratch_operands = 0 : i64, tpu.core_type = #tpu.core_type<tc>, window_params = [{transform_indices = @transform_0, window_bounds = array<i64: 2, 16, 64>}, {pipeline_mode = #tpu.pipeline_mode<synchronous>, transform_indices = @transform_1, window_bounds = array<i64: 64, 64>}, {pipeline_mode = #tpu.pipeline_mode<synchronous>, transform_indices = @transform_2, window_bounds = array<i64: 64, 384>}, {pipeline_mode = #tpu.pipeline_mode<synchronous>, transform_indices = @transform_3, window_bounds = array<i64: 64, 64>}, {pipeline_mode = #tpu.pipeline_mode<synchronous>, transform_indices = @transform_4, window_bounds = array<i64: 64, 128>}, {pipeline_mode = #tpu.pipeline_mode<synchronous>, transform_indices = @transform_5, window_bounds = array<i64: 128, 64>}, {pipeline_mode = #tpu.pipeline_mode<synchronous>, transform_indices = @transform_6, window_bounds = array<i64: 64, 128>}, {pipeline_mode = #tpu.pipeline_mode<synchronous>, transform_indices = @transform_7, window_bounds = array<i64: 128, 128>}, {pipeline_mode = #tpu.pipeline_mode<synchronous>, transform_indices = @transform_8, window_bounds = array<i64: 16, 128>}, {transform_indices = @transform_9, window_bounds = array<i64: 2, 128>}]} {
    %c0 = arith.constant 0 : index
    %c0_0 = arith.constant 0 : index
    %0 = vector.load %arg9[%c0, %c0_0] : memref<16x128xf32, #tpu.memory_space<vmem>>, vector<1x64xf32>
    %c1 = arith.constant 1 : index
    %c0_1 = arith.constant 0 : index
    %1 = vector.load %arg9[%c1, %c0_1] : memref<16x128xf32, #tpu.memory_space<vmem>>, vector<1x64xf32>
    %c2 = arith.constant 2 : index
    %c0_2 = arith.constant 0 : index
    %2 = vector.load %arg9[%c2, %c0_2] : memref<16x128xf32, #tpu.memory_space<vmem>>, vector<1x64xf32>
    %c3 = arith.constant 3 : index
    %c0_3 = arith.constant 0 : index
    %3 = vector.load %arg9[%c3, %c0_3] : memref<16x128xf32, #tpu.memory_space<vmem>>, vector<1x64xf32>
    %c4 = arith.constant 4 : index
    %c0_4 = arith.constant 0 : index
    %4 = vector.load %arg9[%c4, %c0_4] : memref<16x128xf32, #tpu.memory_space<vmem>>, vector<1x64xf32>
    %c5 = arith.constant 5 : index
    %c0_5 = arith.constant 0 : index
    %5 = vector.load %arg9[%c5, %c0_5] : memref<16x128xf32, #tpu.memory_space<vmem>>, vector<1x64xf32>
    %c6 = arith.constant 6 : index
    %c0_6 = arith.constant 0 : index
    %6 = vector.load %arg9[%c6, %c0_6] : memref<16x128xf32, #tpu.memory_space<vmem>>, vector<1x64xf32>
    %c7 = arith.constant 7 : index
    %c0_7 = arith.constant 0 : index
    %7 = vector.load %arg9[%c7, %c0_7] : memref<16x128xf32, #tpu.memory_space<vmem>>, vector<1x128xf32>
    %c8 = arith.constant 8 : index
    %c0_8 = arith.constant 0 : index
    %8 = vector.load %arg9[%c8, %c0_8] : memref<16x128xf32, #tpu.memory_space<vmem>>, vector<1x64xf32>
    %c9 = arith.constant 9 : index
    %c0_9 = arith.constant 0 : index
    %9 = vector.load %arg9[%c9, %c0_9] : memref<16x128xf32, #tpu.memory_space<vmem>>, vector<1x64xf32>
    %c10 = arith.constant 10 : index
    %c0_10 = arith.constant 0 : index
    %10 = vector.load %arg9[%c10, %c0_10] : memref<16x128xf32, #tpu.memory_space<vmem>>, vector<1x64xf32>
    %c11 = arith.constant 11 : index
    %c0_11 = arith.constant 0 : index
    %11 = vector.load %arg9[%c11, %c0_11] : memref<16x128xf32, #tpu.memory_space<vmem>>, vector<1x64xf32>
    %c12 = arith.constant 12 : index
    %c0_12 = arith.constant 0 : index
    %12 = vector.load %arg9[%c12, %c0_12] : memref<16x128xf32, #tpu.memory_space<vmem>>, vector<1x64xf32>
    %c13 = arith.constant 13 : index
    %c0_13 = arith.constant 0 : index
    %13 = vector.load %arg9[%c13, %c0_13] : memref<16x128xf32, #tpu.memory_space<vmem>>, vector<1x128xf32>
    %c14 = arith.constant 14 : index
    %c0_14 = arith.constant 0 : index
    %14 = vector.load %arg9[%c14, %c0_14] : memref<16x128xf32, #tpu.memory_space<vmem>>, vector<1x128xf32>
    %c0_15 = arith.constant 0 : index
    %c0_16 = arith.constant 0 : index
    %c0_17 = arith.constant 0 : index
    %15 = vector.load %arg1[%c0_15, %c0_16, %c0_17] : memref<2x16x64xf32, #tpu.memory_space<vmem>>, vector<2x16x64xf32>
    %16 = vector.shape_cast %15 : vector<2x16x64xf32> to vector<32x64xf32>
    %17 = arith.truncf %16 : vector<32x64xf32> to vector<32x64xbf16>
    %c0_18 = arith.constant 0 : index
    %c0_19 = arith.constant 0 : index
    %18 = vector.load %arg2[%c0_18, %c0_19] : memref<64x64xbf16, #tpu.memory_space<vmem>>, vector<64x64xbf16>
    %cst = arith.constant dense<0.000000e+00> : vector<32x64xf32>
    %19 = tpu.matmul %17, %18, %cst {dimension_numbers = #tpu.dot_dimension_numbers<[1], [0], [0], [1], [0, 0, 1, 1], [], []>} : vector<32x64xbf16>, vector<64x64xbf16>, vector<32x64xf32> -> vector<32x64xf32>
    %20 = vector.broadcast %0 : vector<1x64xf32> to vector<32x64xf32>
    %21 = arith.addf %19, %20 : vector<32x64xf32>
    %cst_20 = arith.constant 0.000000e+00 : f32
    %22 = vector.broadcast %cst_20 : f32 to vector<32x64xf32>
    %23 = arith.maximumf %21, %22 : vector<32x64xf32>
    %24 = arith.truncf %23 : vector<32x64xf32> to vector<32x64xbf16>
    %c0_21 = arith.constant 0 : index
    %c0_22 = arith.constant 0 : index
    %25 = vector.load %arg3[%c0_21, %c0_22] : memref<64x384xbf16, #tpu.memory_space<vmem>>, vector<64x384xbf16>
    %cst_23 = arith.constant dense<0.000000e+00> : vector<32x384xf32>
    %26 = tpu.matmul %24, %25, %cst_23 {dimension_numbers = #tpu.dot_dimension_numbers<[1], [0], [0], [1], [0, 0, 1, 1], [], []>} : vector<32x64xbf16>, vector<64x384xbf16>, vector<32x384xf32> -> vector<32x384xf32>
    %27 = vector.extract_strided_slice %26 {offsets = [0, 0], sizes = [32, 64], strides = [1, 1]} : vector<32x384xf32> to vector<32x64xf32>
    %28 = vector.broadcast %1 : vector<1x64xf32> to vector<32x64xf32>
    %29 = arith.addf %27, %28 : vector<32x64xf32>
    %30 = vector.shape_cast %29 : vector<32x64xf32> to vector<2x16x64xf32>
    %31 = vector.extract_strided_slice %26 {offsets = [0, 128], sizes = [32, 64], strides = [1, 1]} : vector<32x384xf32> to vector<32x64xf32>
    %32 = vector.broadcast %2 : vector<1x64xf32> to vector<32x64xf32>
    %33 = arith.addf %31, %32 : vector<32x64xf32>
    %34 = vector.shape_cast %33 : vector<32x64xf32> to vector<2x16x64xf32>
    %35 = vector.extract_strided_slice %26 {offsets = [0, 256], sizes = [32, 64], strides = [1, 1]} : vector<32x384xf32> to vector<32x64xf32>
    %36 = vector.broadcast %3 : vector<1x64xf32> to vector<32x64xf32>
    %37 = arith.addf %35, %36 : vector<32x64xf32>
    %38 = vector.shape_cast %37 : vector<32x64xf32> to vector<2x16x64xf32>
    %39 = arith.truncf %30 : vector<2x16x64xf32> to vector<2x16x64xbf16>
    %40 = arith.truncf %34 : vector<2x16x64xf32> to vector<2x16x64xbf16>
    "tpu.trace_start"() <{level = 10 : i32, message = "bqd,bkd->bqk"}> : () -> ()
    %cst_24 = arith.constant dense<0.000000e+00> : vector<2x16x16xf32>
    %41 = tpu.matmul %39, %40, %cst_24 {dimension_numbers = #tpu.dot_dimension_numbers<[2], [2], [1], [1], [0, 0, 0, 1, 1, 1], [0], [0]>} : vector<2x16x64xbf16>, vector<2x16x64xbf16>, vector<2x16x16xf32> -> vector<2x16x16xf32>
    "tpu.trace_stop"() : () -> ()
    %cst_25 = arith.constant 1.250000e-01 : f32
    %42 = vector.broadcast %cst_25 : f32 to vector<2x16x16xf32>
    %43 = arith.mulf %41, %42 : vector<2x16x16xf32>
    %cst_26 = arith.constant dense<0xFF800000> : vector<2x16xf32>
    %44 = vector.multi_reduction <maximumf>, %43, %cst_26 [2] : vector<2x16x16xf32> to vector<2x16xf32>
    %45 = vector.shape_cast %44 : vector<2x16xf32> to vector<2x16x1xf32>
    %46 = vector.broadcast %45 : vector<2x16x1xf32> to vector<2x16x16xf32>
    %47 = arith.subf %43, %46 : vector<2x16x16xf32>
    %48 = math.exp %47 : vector<2x16x16xf32>
    %cst_27 = arith.constant dense<0.000000e+00> : vector<2x16xf32>
    %49 = vector.multi_reduction <add>, %48, %cst_27 [2] : vector<2x16x16xf32> to vector<2x16xf32>
    %50 = vector.shape_cast %49 : vector<2x16xf32> to vector<2x16x1xf32>
    %51 = tpu.reciprocal %50 {approx = true} : vector<2x16x1xf32> -> vector<2x16x1xf32>
    %52 = vector.broadcast %51 : vector<2x16x1xf32> to vector<2x16x16xf32>
    %53 = arith.mulf %48, %52 : vector<2x16x16xf32>
    %54 = arith.truncf %53 : vector<2x16x16xf32> to vector<2x16x16xbf16>
    %55 = arith.truncf %38 : vector<2x16x64xf32> to vector<2x16x64xbf16>
    "tpu.trace_start"() <{level = 10 : i32, message = "bqk,bkd->bqd"}> : () -> ()
    %cst_28 = arith.constant dense<0.000000e+00> : vector<2x16x64xf32>
    %56 = tpu.matmul %54, %55, %cst_28 {dimension_numbers = #tpu.dot_dimension_numbers<[2], [1], [1], [2], [0, 0, 0, 1, 1, 2], [0], [0]>} : vector<2x16x16xbf16>, vector<2x16x64xbf16>, vector<2x16x64xf32> -> vector<2x16x64xf32>
    "tpu.trace_stop"() : () -> ()
    %57 = vector.shape_cast %56 : vector<2x16x64xf32> to vector<32x64xf32>
    %58 = arith.truncf %57 : vector<32x64xf32> to vector<32x64xbf16>
    %c0_29 = arith.constant 0 : index
    %c0_30 = arith.constant 0 : index
    %59 = vector.load %arg4[%c0_29, %c0_30] : memref<64x64xbf16, #tpu.memory_space<vmem>>, vector<64x64xbf16>
    %cst_31 = arith.constant dense<0.000000e+00> : vector<32x64xf32>
    %60 = tpu.matmul %58, %59, %cst_31 {dimension_numbers = #tpu.dot_dimension_numbers<[1], [0], [0], [1], [0, 0, 1, 1], [], []>} : vector<32x64xbf16>, vector<64x64xbf16>, vector<32x64xf32> -> vector<32x64xf32>
    %61 = vector.broadcast %4 : vector<1x64xf32> to vector<32x64xf32>
    %62 = arith.addf %60, %61 : vector<32x64xf32>
    %63 = arith.addf %23, %62 : vector<32x64xf32>
    %cst_32 = arith.constant dense<0.000000e+00> : vector<32xf32>
    %64 = vector.multi_reduction <add>, %63, %cst_32 [1] : vector<32x64xf32> to vector<32xf32>
    %65 = vector.shape_cast %64 : vector<32xf32> to vector<32x1xf32>
    %cst_33 = arith.constant 6.400000e+01 : f32
    %66 = vector.broadcast %cst_33 : f32 to vector<32x1xf32>
    %67 = arith.divf %65, %66 : vector<32x1xf32>
    %68 = vector.broadcast %67 : vector<32x1xf32> to vector<32x64xf32>
    %69 = arith.subf %63, %68 : vector<32x64xf32>
    %70 = arith.mulf %69, %69 : vector<32x64xf32>
    %cst_34 = arith.constant dense<0.000000e+00> : vector<32xf32>
    %71 = vector.multi_reduction <add>, %70, %cst_34 [1] : vector<32x64xf32> to vector<32xf32>
    %72 = vector.shape_cast %71 : vector<32xf32> to vector<32x1xf32>
    %cst_35 = arith.constant 6.400000e+01 : f32
    %73 = vector.broadcast %cst_35 : f32 to vector<32x1xf32>
    %74 = arith.divf %72, %73 : vector<32x1xf32>
    %75 = vector.broadcast %67 : vector<32x1xf32> to vector<32x64xf32>
    %76 = arith.subf %63, %75 : vector<32x64xf32>
    %cst_36 = arith.constant 9.99999974E-6 : f32
    %77 = vector.broadcast %cst_36 : f32 to vector<32x1xf32>
    %78 = arith.addf %74, %77 : vector<32x1xf32>
    %79 = math.rsqrt %78 : vector<32x1xf32>
    %80 = vector.broadcast %79 : vector<32x1xf32> to vector<32x64xf32>
    %81 = arith.mulf %76, %80 : vector<32x64xf32>
    %82 = vector.broadcast %5 : vector<1x64xf32> to vector<32x64xf32>
    %83 = arith.mulf %81, %82 : vector<32x64xf32>
    %84 = vector.broadcast %6 : vector<1x64xf32> to vector<32x64xf32>
    %85 = arith.addf %83, %84 : vector<32x64xf32>
    %86 = arith.truncf %85 : vector<32x64xf32> to vector<32x64xbf16>
    %c0_37 = arith.constant 0 : index
    %c0_38 = arith.constant 0 : index
    %87 = vector.load %arg5[%c0_37, %c0_38] : memref<64x128xbf16, #tpu.memory_space<vmem>>, vector<64x128xbf16>
    %cst_39 = arith.constant dense<0.000000e+00> : vector<32x128xf32>
    %88 = tpu.matmul %86, %87, %cst_39 {dimension_numbers = #tpu.dot_dimension_numbers<[1], [0], [0], [1], [0, 0, 1, 1], [], []>} : vector<32x64xbf16>, vector<64x128xbf16>, vector<32x128xf32> -> vector<32x128xf32>
    %89 = vector.broadcast %7 : vector<1x128xf32> to vector<32x128xf32>
    %90 = arith.addf %88, %89 : vector<32x128xf32>
    %cst_40 = arith.constant 0.000000e+00 : f32
    %91 = vector.broadcast %cst_40 : f32 to vector<32x128xf32>
    %92 = arith.maximumf %90, %91 : vector<32x128xf32>
    %93 = arith.truncf %92 : vector<32x128xf32> to vector<32x128xbf16>
    %c0_41 = arith.constant 0 : index
    %c0_42 = arith.constant 0 : index
    %94 = vector.load %arg6[%c0_41, %c0_42] : memref<128x64xbf16, #tpu.memory_space<vmem>>, vector<128x64xbf16>
    %cst_43 = arith.constant dense<0.000000e+00> : vector<32x64xf32>
    %95 = tpu.matmul %93, %94, %cst_43 {dimension_numbers = #tpu.dot_dimension_numbers<[1], [0], [0], [1], [0, 0, 1, 1], [], []>} : vector<32x128xbf16>, vector<128x64xbf16>, vector<32x64xf32> -> vector<32x64xf32>
    %96 = vector.broadcast %8 : vector<1x64xf32> to vector<32x64xf32>
    %97 = arith.addf %95, %96 : vector<32x64xf32>
    %98 = arith.addf %85, %97 : vector<32x64xf32>
    %cst_44 = arith.constant dense<0.000000e+00> : vector<32xf32>
    %99 = vector.multi_reduction <add>, %98, %cst_44 [1] : vector<32x64xf32> to vector<32xf32>
    %100 = vector.shape_cast %99 : vector<32xf32> to vector<32x1xf32>
    %cst_45 = arith.constant 6.400000e+01 : f32
    %101 = vector.broadcast %cst_45 : f32 to vector<32x1xf32>
    %102 = arith.divf %100, %101 : vector<32x1xf32>
    %103 = vector.broadcast %102 : vector<32x1xf32> to vector<32x64xf32>
    %104 = arith.subf %98, %103 : vector<32x64xf32>
    %105 = arith.mulf %104, %104 : vector<32x64xf32>
    %cst_46 = arith.constant dense<0.000000e+00> : vector<32xf32>
    %106 = vector.multi_reduction <add>, %105, %cst_46 [1] : vector<32x64xf32> to vector<32xf32>
    %107 = vector.shape_cast %106 : vector<32xf32> to vector<32x1xf32>
    %cst_47 = arith.constant 6.400000e+01 : f32
    %108 = vector.broadcast %cst_47 : f32 to vector<32x1xf32>
    %109 = arith.divf %107, %108 : vector<32x1xf32>
    %110 = vector.broadcast %102 : vector<32x1xf32> to vector<32x64xf32>
    %111 = arith.subf %98, %110 : vector<32x64xf32>
    %cst_48 = arith.constant 9.99999974E-6 : f32
    %112 = vector.broadcast %cst_48 : f32 to vector<32x1xf32>
    %113 = arith.addf %109, %112 : vector<32x1xf32>
    %114 = math.rsqrt %113 : vector<32x1xf32>
    %115 = vector.broadcast %114 : vector<32x1xf32> to vector<32x64xf32>
    %116 = arith.mulf %111, %115 : vector<32x64xf32>
    %117 = vector.broadcast %9 : vector<1x64xf32> to vector<32x64xf32>
    %118 = arith.mulf %116, %117 : vector<32x64xf32>
    %119 = vector.broadcast %10 : vector<1x64xf32> to vector<32x64xf32>
    %120 = arith.addf %118, %119 : vector<32x64xf32>
    %cst_49 = arith.constant dense<0.000000e+00> : vector<32xf32>
    %121 = vector.multi_reduction <add>, %120, %cst_49 [1] : vector<32x64xf32> to vector<32xf32>
    %122 = vector.shape_cast %121 : vector<32xf32> to vector<32x1xf32>
    %cst_50 = arith.constant 6.400000e+01 : f32
    %123 = vector.broadcast %cst_50 : f32 to vector<32x1xf32>
    %124 = arith.divf %122, %123 : vector<32x1xf32>
    %125 = vector.broadcast %124 : vector<32x1xf32> to vector<32x64xf32>
    %126 = arith.subf %120, %125 : vector<32x64xf32>
    %127 = arith.mulf %126, %126 : vector<32x64xf32>
    %cst_51 = arith.constant dense<0.000000e+00> : vector<32xf32>
    %128 = vector.multi_reduction <add>, %127, %cst_51 [1] : vector<32x64xf32> to vector<32xf32>
    %129 = vector.shape_cast %128 : vector<32xf32> to vector<32x1xf32>
    %cst_52 = arith.constant 6.400000e+01 : f32
    %130 = vector.broadcast %cst_52 : f32 to vector<32x1xf32>
    %131 = arith.divf %129, %130 : vector<32x1xf32>
    %132 = vector.broadcast %124 : vector<32x1xf32> to vector<32x64xf32>
    %133 = arith.subf %120, %132 : vector<32x64xf32>
    %cst_53 = arith.constant 9.99999974E-6 : f32
    %134 = vector.broadcast %cst_53 : f32 to vector<32x1xf32>
    %135 = arith.addf %131, %134 : vector<32x1xf32>
    %136 = math.rsqrt %135 : vector<32x1xf32>
    %137 = vector.broadcast %136 : vector<32x1xf32> to vector<32x64xf32>
    %138 = arith.mulf %133, %137 : vector<32x64xf32>
    %139 = vector.broadcast %11 : vector<1x64xf32> to vector<32x64xf32>
    %140 = arith.mulf %138, %139 : vector<32x64xf32>
    %141 = vector.broadcast %12 : vector<1x64xf32> to vector<32x64xf32>
    %142 = arith.addf %140, %141 : vector<32x64xf32>
    %143 = vector.shape_cast %142 : vector<32x64xf32> to vector<2x16x64xf32>
    %cst_54 = arith.constant dense<0xFF800000> : vector<2x64xf32>
    %144 = vector.multi_reduction <maximumf>, %143, %cst_54 [1] : vector<2x16x64xf32> to vector<2x64xf32>
    %cst_55 = arith.constant 0.000000e+00 : f32
    %145 = vector.broadcast %cst_55 : f32 to vector<2x64xf32>
    %146 = arith.maximumf %144, %145 : vector<2x64xf32>
    %147 = arith.truncf %146 : vector<2x64xf32> to vector<2x64xbf16>
    %c0_56 = arith.constant 0 : index
    %c0_57 = arith.constant 0 : index
    %148 = vector.load %arg7[%c0_56, %c0_57] : memref<64x128xbf16, #tpu.memory_space<vmem>>, vector<64x128xbf16>
    %cst_58 = arith.constant dense<0.000000e+00> : vector<2x128xf32>
    %149 = tpu.matmul %147, %148, %cst_58 {dimension_numbers = #tpu.dot_dimension_numbers<[1], [0], [0], [1], [0, 0, 1, 1], [], []>} : vector<2x64xbf16>, vector<64x128xbf16>, vector<2x128xf32> -> vector<2x128xf32>
    %150 = vector.broadcast %13 : vector<1x128xf32> to vector<2x128xf32>
    %151 = arith.addf %149, %150 : vector<2x128xf32>
    %152 = arith.truncf %151 : vector<2x128xf32> to vector<2x128xbf16>
    %c0_59 = arith.constant 0 : index
    %c0_60 = arith.constant 0 : index
    %153 = vector.load %arg8[%c0_59, %c0_60] : memref<128x128xbf16, #tpu.memory_space<vmem>>, vector<128x128xbf16>
    %cst_61 = arith.constant dense<0.000000e+00> : vector<2x128xf32>
    %154 = tpu.matmul %152, %153, %cst_61 {dimension_numbers = #tpu.dot_dimension_numbers<[1], [0], [0], [1], [0, 0, 1, 1], [], []>} : vector<2x128xbf16>, vector<128x128xbf16>, vector<2x128xf32> -> vector<2x128xf32>
    %155 = vector.broadcast %14 : vector<1x128xf32> to vector<2x128xf32>
    %156 = arith.addf %154, %155 : vector<2x128xf32>
    %c0_62 = arith.constant 0 : index
    %c0_63 = arith.constant 0 : index
    %157 = vector.load %arg10[%c0_62, %c0_63] : memref<2x128xf32, #tpu.memory_space<vmem>>, vector<2x128xf32>
    tpu.vector_store %arg10[%c0_62, %c0_63], %156 {strides = array<i32>} : memref<2x128xf32, #tpu.memory_space<vmem>>, vector<2x128xf32>,
    return
  }
  func.func @transform_0(%arg0: i32) -> (i32, i32, i32) {
    %c0_i32 = arith.constant 0 : i32
    %c0_i32_0 = arith.constant 0 : i32
    %c0_i32_1 = arith.constant 0 : i32
    return %arg0, %c0_i32, %c0_i32_0 : i32, i32, i32
  }
  func.func @transform_1(%arg0: i32) -> (i32, i32) {
    %c0_i32 = arith.constant 0 : i32
    %c0_i32_0 = arith.constant 0 : i32
    %c0_i32_1 = arith.constant 0 : i32
    return %c0_i32, %c0_i32_0 : i32, i32
  }
  func.func @transform_2(%arg0: i32) -> (i32, i32) {
    %c0_i32 = arith.constant 0 : i32
    %c0_i32_0 = arith.constant 0 : i32
    %c0_i32_1 = arith.constant 0 : i32
    return %c0_i32, %c0_i32_0 : i32, i32
  }
  func.func @transform_3(%arg0: i32) -> (i32, i32) {
    %c0_i32 = arith.constant 0 : i32
    %c0_i32_0 = arith.constant 0 : i32
    %c0_i32_1 = arith.constant 0 : i32
    return %c0_i32, %c0_i32_0 : i32, i32
  }
  func.func @transform_4(%arg0: i32) -> (i32, i32) {
    %c0_i32 = arith.constant 0 : i32
    %c0_i32_0 = arith.constant 0 : i32
    %c0_i32_1 = arith.constant 0 : i32
    return %c0_i32, %c0_i32_0 : i32, i32
  }
  func.func @transform_5(%arg0: i32) -> (i32, i32) {
    %c0_i32 = arith.constant 0 : i32
    %c0_i32_0 = arith.constant 0 : i32
    %c0_i32_1 = arith.constant 0 : i32
    return %c0_i32, %c0_i32_0 : i32, i32
  }
  func.func @transform_6(%arg0: i32) -> (i32, i32) {
    %c0_i32 = arith.constant 0 : i32
    %c0_i32_0 = arith.constant 0 : i32
    %c0_i32_1 = arith.constant 0 : i32
    return %c0_i32, %c0_i32_0 : i32, i32
  }
  func.func @transform_7(%arg0: i32) -> (i32, i32) {
    %c0_i32 = arith.constant 0 : i32
    %c0_i32_0 = arith.constant 0 : i32
    %c0_i32_1 = arith.constant 0 : i32
    return %c0_i32, %c0_i32_0 : i32, i32
  }
  func.func @transform_8(%arg0: i32) -> (i32, i32) {
    %c0_i32 = arith.constant 0 : i32
    %c0_i32_0 = arith.constant 0 : i32
    %c0_i32_1 = arith.constant 0 : i32
    return %c0_i32, %c0_i32_0 : i32, i32
  }
  func.func @transform_9(%arg0: i32) -> (i32, i32) {
    %c0_i32 = arith.constant 0 : i32
    %c0_i32_0 = arith.constant 0 : i32
    return %arg0, %c0_i32 : i32, i32
  }
}

</mosaic_0001>

<llo_original>
// kernel: _lambda_.1
$region0: #{_lambda_.1}
  #allocation0 [shape = 'u32[]', space=smem, size = 0x4, offset = 0x4, fixed_abs, tag = 'smem constant byte address 0x4 - core index']
  #allocation1 [shape = 'u32[144,128]{1,0:T(1,128)}', space=vmem, size = 0x12000, scoped, tag = 'internal scratch']
  %s0 = inlined_call_operand.vmem [shape: f32[2,16,64], index: 0, kind: input, shape index: {}]
  %s1 = inlined_call_operand.hbm [shape: bf16[64,64], index: 1, kind: input, shape index: {}]
  %s2 = inlined_call_operand.vmem [shape: bf16[64,384], index: 2, kind: input, shape index: {}]
  %s3 = inlined_call_operand.hbm [shape: bf16[64,64], index: 3, kind: input, shape index: {}]
  %s4 = inlined_call_operand.vmem [shape: bf16[64,128], index: 4, kind: input, shape index: {}]
  %s5 = inlined_call_operand.vmem [shape: bf16[128,64], index: 5, kind: input, shape index: {}]
  %s6 = inlined_call_operand.vmem [shape: bf16[64,128], index: 6, kind: input, shape index: {}]
  %s7 = inlined_call_operand.vmem [shape: bf16[128,128], index: 7, kind: input, shape index: {}]
  %s8 = inlined_call_operand.hbm [shape: f32[16,128], index: 8, kind: input, shape index: {}]
  %s9 = inlined_call_operand.hbm [shape: f32[2,128], index: 9, kind: output, shape index: {}]
  %s10 = sld [smem:[#allocation0]]
  $region58: #{_lambda_.1} parent=0
    _
  %s12 = ssub.s32 1, %s10
  %s13 = scalar_select 0, %s12, %s10
  $region1: #{_lambda_.1} parent=0
    #allocation2 [shape = 'u8[16384]{0}', space=vmem, size = 0x4000, scoped, tag = 'input window, operand 1, single buffered']
    #allocation3 [shape = 's32[1]{0}', space=sflag, size = 0x4, scoped, tag = 'scoped memory for _lambda_.1']
    #allocation4 [shape = 's32[1]{0}', space=sflag, size = 0x4, scoped, tag = 'scoped memory for _lambda_.1']
    #allocation5 [shape = 'u8[16384]{0}', space=vmem, size = 0x4000, scoped, tag = 'input window, operand 3, single buffered']
    #allocation6 [shape = 's32[1]{0}', space=sflag, size = 0x4, scoped, tag = 'scoped memory for _lambda_.1']
    #allocation7 [shape = 'u8[8192]{0}', space=vmem, size = 0x2000, scoped, tag = 'input window, operand 8, single buffered']
    #allocation8 [shape = 'u8[1024]{0}', space=vmem, size = 0x400, scoped, tag = 'output window, operand 0, single buffered']
    %14 = vsyncpa [#allocation3], 0
    %15 = vsyncpa [#allocation6], 0
    %16 = vsyncpa [#allocation4], 0
    // Predicated region
    $region2: #{_lambda_.1} parent=1 // pred_check
      _
    $region3: #{_lambda_.1} parent=1 // pred_check_branch
      %18 = sbr.rel (0) target = $region5
    $region4: #{_lambda_.1} parent=1 // pred_region
      _
    $region5: #{_lambda_.1} parent=1 // pred_fallthru
      _
    // Predicated region
    $region6: #{_lambda_.1} parent=1 // pred_check
      _
    $region7: #{_lambda_.1} parent=1 // pred_check_branch
      %20 = sbr.rel (0) target = $region9
    $region8: #{_lambda_.1} parent=1 // pred_region
      %s22 = ssub.s32 512, 512
      %23 = vsyncadd [#allocation3], %s22
      %s24 = sshll.u32 [#allocation2], 4
      %s25 = int_to_ptr.vmem [resolvable:$true] %s24
      %30 = dma.hbm_to_vmem [thread:$0]  %s1, 512, %s25, [#allocation3], 64, 64, 4
    $region9: #{_lambda_.1} parent=1 // pred_fallthru
      _
    // Predicated region
    $region10: #{_lambda_.1} parent=1 // pred_check
      _
    $region11: #{_lambda_.1} parent=1 // pred_check_branch
      %32 = sbr.rel (0) target = $region13
    $region12: #{_lambda_.1} parent=1 // pred_region
      _
    $region13: #{_lambda_.1} parent=1 // pred_fallthru
      _
    // Predicated region
    $region14: #{_lambda_.1} parent=1 // pred_check
      _
    $region15: #{_lambda_.1} parent=1 // pred_check_branch
      %34 = sbr.rel (0) target = $region17
    $region16: #{_lambda_.1} parent=1 // pred_region
      %s36 = ssub.s32 512, 512
      %37 = vsyncadd [#allocation6], %s36
      %s38 = sshll.u32 [#allocation5], 4
      %s39 = int_to_ptr.vmem [resolvable:$true] %s38
      %44 = dma.hbm_to_vmem [thread:$0]  %s3, 512, %s39, [#allocation6], 64, 64, 4
    $region17: #{_lambda_.1} parent=1 // pred_fallthru
      _
    // Predicated region
    $region18: #{_lambda_.1} parent=1 // pred_check
      _
    $region19: #{_lambda_.1} parent=1 // pred_check_branch
      %46 = sbr.rel (0) target = $region21
    $region20: #{_lambda_.1} parent=1 // pred_region
      _
    $region21: #{_lambda_.1} parent=1 // pred_fallthru
      _
    // Predicated region
    $region22: #{_lambda_.1} parent=1 // pred_check
      _
    $region23: #{_lambda_.1} parent=1 // pred_check_branch
      %48 = sbr.rel (0) target = $region25
    $region24: #{_lambda_.1} parent=1 // pred_region
      _
    $region25: #{_lambda_.1} parent=1 // pred_fallthru
      _
    // Predicated region
    $region26: #{_lambda_.1} parent=1 // pred_check
      _
    $region27: #{_lambda_.1} parent=1 // pred_check_branch
      %50 = sbr.rel (0) target = $region29
    $region28: #{_lambda_.1} parent=1 // pred_region
      _
    $region29: #{_lambda_.1} parent=1 // pred_fallthru
      _
    // Predicated region
    $region30: #{_lambda_.1} parent=1 // pred_check
      _
    $region31: #{_lambda_.1} parent=1 // pred_check_branch
      %52 = sbr.rel (0) target = $region33
    $region32: #{_lambda_.1} parent=1 // pred_region
      _
    $region33: #{_lambda_.1} parent=1 // pred_fallthru
      _
    // Predicated region
    $region34: #{_lambda_.1} parent=1 // pred_check
      _
    $region35: #{_lambda_.1} parent=1 // pred_check_branch
      %54 = sbr.rel (0) target = $region37
    $region36: #{_lambda_.1} parent=1 // pred_region
      %s56 = ssub.s32 256, 256
      %57 = vsyncadd [#allocation6], %s56
      %s58 = sshll.u32 [#allocation7], 4
      %s59 = int_to_ptr.vmem [resolvable:$true] %s58
      %64 = dma.hbm_to_vmem [thread:$0]  %s8, 256, %s59, [#allocation6], 128, 128, 8
    $region37: #{_lambda_.1} parent=1 // pred_fallthru
      _
    // Predicated region
    $region38: #{_lambda_.1} parent=1 // pred_check
      _
    $region39: #{_lambda_.1} parent=1 // pred_check_branch
      %66 = sbr.rel (0) target = $region41
    $region40: #{_lambda_.1} parent=1 // pred_region
      %67 = dma.done [#allocation3], 512
    $region41: #{_lambda_.1} parent=1 // pred_fallthru
      _
    // Predicated region
    $region42: #{_lambda_.1} parent=1 // pred_check
      _
    $region43: #{_lambda_.1} parent=1 // pred_check_branch
      %69 = sbr.rel (0) target = $region45
    $region44: #{_lambda_.1} parent=1 // pred_region
      %70 = dma.done [#allocation6], 512
    $region45: #{_lambda_.1} parent=1 // pred_fallthru
      _
    // Predicated region
    $region46: #{_lambda_.1} parent=1 // pred_check
      _
    $region47: #{_lambda_.1} parent=1 // pred_check_branch
      %72 = sbr.rel (0) target = $region49
    $region48: #{_lambda_.1} parent=1 // pred_region
      %73 = dma.done [#allocation6], 256
    $region49: #{_lambda_.1} parent=1 // pred_fallthru
      _
    %v75 = vld [vmem:[#allocation7] sm:$0x1]
    %v76 = vld [vmem:[#allocation7 + $0x1] sm:$0x1]
    %v77 = vld [vmem:[#allocation7 + $0x2] sm:$0x1]
    %v78 = vld [vmem:[#allocation7 + $0x3] sm:$0x1]
    %v79 = vld [vmem:[#allocation7 + $0x4] sm:$0x1]
    %v80 = vld [vmem:[#allocation7 + $0x5] sm:$0x1]
    %v81 = vld [vmem:[#allocation7 + $0x6] sm:$0x1]
    %v82 = vld [vmem:[#allocation7 + $0x7] sm:$0x1]
    %v83 = vld [vmem:[#allocation7 + $0x8] sm:$0x1]
    %v84 = vld [vmem:[#allocation7 + $0x9] sm:$0x1]
    %v85 = vld [vmem:[#allocation7 + $0xa] sm:$0x1]
    %v86 = vld [vmem:[#allocation7 + $0xb] sm:$0x1]
    %v87 = vld [vmem:[#allocation7 + $0xc] sm:$0x1]
    %v88 = vld [vmem:[#allocation7 + $0xd] sm:$0x1]
    %v89 = vld [vmem:[#allocation7 + $0xe] sm:$0x1]
    %v90 = vld [vmem:[%s0] sm:$0xff]
    %v91 = vld [vmem:[%s0 + $0x8] sm:$0xff]
    %v92 = vld [vmem:[%s0 + $0x10] sm:$0xff]
    %v93 = vld [vmem:[%s0 + $0x18] sm:$0xff]
    %v94 = vpack.c.bf16 %v91, %v90
    %v95 = vpack.c.bf16 %v93, %v92
    %v96 = vld [vmem:[#allocation2] sm:$0xf]
    %v97 = vld [vmem:[#allocation2 + $0x4] sm:$0xf]
    %v98 = vld [vmem:[#allocation2 + $0x8] sm:$0xf]
    %v99 = vld [vmem:[#allocation2 + $0xc] sm:$0xf]
    %v100 = vld [vmem:[#allocation2 + $0x10] sm:$0xf]
    %v101 = vld [vmem:[#allocation2 + $0x14] sm:$0xf]
    %v102 = vld [vmem:[#allocation2 + $0x18] sm:$0xf]
    %v103 = vld [vmem:[#allocation2 + $0x1c] sm:$0xf]
    %v104 = vlaneseq
    %v105 = vshrl.u32 %v104, 7
    %v106 = vsub.s32 0, %v105
    %v107 = vrot.slane %v75, %v106
    %v116 = vunpack.c.l.b16 %v96
    %v117 = vunpack.c.l.b16 %v97
    %v118 = vunpack.c.l.b16 %v98
    %v119 = vunpack.c.l.b16 %v99
    %v120 = vunpack.c.l.b16 %v100
    %v121 = vunpack.c.l.b16 %v101
    %v122 = vunpack.c.l.b16 %v102
    %v123 = vunpack.c.l.b16 %v103
    %v124 = vpack.c.b16 %v117, %v116
    %v125 = vpack.c.b16 %v119, %v118
    %v126 = vpack.c.b16 %v121, %v120
    %v127 = vpack.c.b16 %v123, %v122
    %vm132 = vcmask 523264
    %v134 = vsel %vm132, %v94, 0
    %v137 = vsel %vm132, %v95, 0
    %139 = vmatprep.subr.bf16.mxu0 0
    %140 = vmatpush1.bf16.msra.mxu0 %v124
    %141 = vmatprep.subr.bf16.mxu0 0
    %142 = vmatpush1.bf16.msra.mxu0 %v125
    %143 = vmatprep.subr.bf16.mxu0 0
    %144 = vmatpush1.bf16.msra.mxu0 %v126
    %145 = vmatprep.subr.bf16.mxu0 0
    %146 = vmatpush1.bf16.msra.mxu0 %v127
    %147 = vmatprep.subr.bf16.mxu0 0
    %148 = vmatpush1.bf16.msra.mxu0 0
    %149 = vmatprep.subr.bf16.mxu0 0
    %150 = vmatpush1.bf16.msra.mxu0 0
    %151 = vmatprep.subr.bf16.mxu0 0
    %152 = vmatpush1.bf16.msra.mxu0 0
    %153 = vmatprep.subr.bf16.mxu0 0
    %154 = vmatpush1.bf16.msra.mxu0 0
    %155 = vmatprep.subr.bf16.mxu0 0
    %156 = vmatpush1.bf16.msra.mxu0 0
    %157 = vmatprep.subr.bf16.mxu0 0
    %158 = vmatpush1.bf16.msra.mxu0 0
    %159 = vmatprep.subr.bf16.mxu0 0
    %160 = vmatpush1.bf16.msra.mxu0 0
    %161 = vmatprep.subr.bf16.mxu0 0
    %162 = vmatpush1.bf16.msra.mxu0 0
    %163 = vmatprep.subr.bf16.mxu0 0
    %164 = vmatpush1.bf16.msra.mxu0 0
    %165 = vmatprep.subr.bf16.mxu0 0
    %166 = vmatpush1.bf16.msra.mxu0 0
    %167 = vmatprep.subr.bf16.mxu0 0
    %168 = vmatpush1.bf16.msra.mxu0 0
    %169 = vmatprep.subr.bf16.mxu0 0
    %170 = vmatpush1.bf16.msra.mxu0 0
    %171 = vmatprep.mubr.bf16.mxu0 0
    %172 = vmatmul.mubr.bf16.gmra.mrb[0].mxu0 %v134
    %v173 = vpop.f32.mrb[0].mxu0
    %v174 = vadd.f32 %v107, %v173
    %v175 = vpop.f32.mrb[0].mxu0
    %v176 = vpop.f32.mrb[0].mxu0
    %v177 = vadd.f32 %v107, %v176
    %v178 = vpop.f32.mrb[0].mxu0
    %179 = vmatprep.mubr.bf16.mxu0 0
    %180 = vmatmul.mubr.bf16.gmra.mrb[0].mxu0 %v137
    %v181 = vpop.f32.mrb[0].mxu0
    %v182 = vadd.f32 %v107, %v181
    %v183 = vpop.f32.mrb[0].mxu0
    %v184 = vpop.f32.mrb[0].mxu0
    %v185 = vadd.f32 %v107, %v184
    %v186 = vpop.f32.mrb[0].mxu0
    %187 = vdwg.mxu0
    %v188 = vmax.f32 %v174, 0.0
    %v189 = vmax.f32 %v177, 0.0
    %v190 = vmax.f32 %v182, 0.0
    %v191 = vmax.f32 %v185, 0.0
    %v192 = vpack.c.bf16 %v189, %v188
    %v193 = vpack.c.bf16 %v191, %v190
    %v194 = vld [vmem:[%s2] sm:$0xff]
    %v195 = vld [vmem:[%s2 + $0x8] sm:$0xf]
    %v196 = vld [vmem:[%s2 + $0xc] sm:$0xff]
    %v197 = vld [vmem:[%s2 + $0x14] sm:$0xf]
    %v198 = vld [vmem:[%s2 + $0x18] sm:$0xff]
    %v199 = vld [vmem:[%s2 + $0x20] sm:$0xf]
    %v200 = vld [vmem:[%s2 + $0x24] sm:$0xff]
    %v201 = vld [vmem:[%s2 + $0x2c] sm:$0xf]
    %v202 = vld [vmem:[%s2 + $0x30] sm:$0xff]
    %v203 = vld [vmem:[%s2 + $0x38] sm:$0xf]
    %v204 = vld [vmem:[%s2 + $0x3c] sm:$0xff]
    %v205 = vld [vmem:[%s2 + $0x44] sm:$0xf]
    %v206 = vld [vmem:[%s2 + $0x48] sm:$0xff]
    %v207 = vld [vmem:[%s2 + $0x50] sm:$0xf]
    %v208 = vld [vmem:[%s2 + $0x54] sm:$0xff]
    %v209 = vld [vmem:[%s2 + $0x5c] sm:$0xf]
    %v226 = vunpack.c.l.b16 %v194
    %v227 = vunpack.c.h.b16 %v194
    %v228 = vunpack.c.l.b16 %v195
    %v229 = vunpack.c.l.b16 %v196
    %v230 = vunpack.c.h.b16 %v196
    %v231 = vunpack.c.l.b16 %v197
    %v232 = vunpack.c.l.b16 %v198
    %v233 = vunpack.c.h.b16 %v198
    %v234 = vunpack.c.l.b16 %v199
    %v235 = vunpack.c.l.b16 %v200
    %v236 = vunpack.c.h.b16 %v200
    %v237 = vunpack.c.l.b16 %v201
    %v238 = vunpack.c.l.b16 %v202
    %v239 = vunpack.c.h.b16 %v202
    %v240 = vunpack.c.l.b16 %v203
    %v241 = vunpack.c.l.b16 %v204
    %v242 = vunpack.c.h.b16 %v204
    %v243 = vunpack.c.l.b16 %v205
    %v244 = vunpack.c.l.b16 %v206
    %v245 = vunpack.c.h.b16 %v206
    %v246 = vunpack.c.l.b16 %v207
    %v247 = vunpack.c.l.b16 %v208
    %v248 = vunpack.c.h.b16 %v208
    %v249 = vunpack.c.l.b16 %v209
    %v250 = vpack.c.b16 %v229, %v226
    %v251 = vpack.c.b16 %v230, %v227
    %v252 = vpack.c.b16 %v231, %v228
    %v253 = vpack.c.b16 %v235, %v232
    %v254 = vpack.c.b16 %v236, %v233
    %v255 = vpack.c.b16 %v237, %v234
    %v256 = vpack.c.b16 %v241, %v238
    %v257 = vpack.c.b16 %v242, %v239
    %v258 = vpack.c.b16 %v243, %v240
    %v259 = vpack.c.b16 %v247, %v244
    %v260 = vpack.c.b16 %v248, %v245
    %v261 = vpack.c.b16 %v249, %v246
    %v275 = vsel %vm132, %v192, 0
    %v278 = vsel %vm132, %v193, 0
    %280 = vmatprep.subr.bf16.mxu0 %v251
    %281 = vmatpush1.bf16.msra.mxu0 %v250
    %282 = vmatprep.subr.bf16.mxu0 %v254
    %283 = vmatpush1.bf16.msra.mxu0 %v253
    %284 = vmatprep.subr.bf16.mxu0 %v257
    %285 = vmatpush1.bf16.msra.mxu0 %v256
    %286 = vmatprep.subr.bf16.mxu0 %v260
    %287 = vmatpush1.bf16.msra.mxu0 %v259
    %288 = vmatprep.subr.bf16.mxu0 0
    %289 = vmatpush1.bf16.msra.mxu0 0
    %290 = vmatprep.subr.bf16.mxu0 0
    %291 = vmatpush1.bf16.msra.mxu0 0
    %292 = vmatprep.subr.bf16.mxu0 0
    %293 = vmatpush1.bf16.msra.mxu0 0
    %294 = vmatprep.subr.bf16.mxu0 0
    %295 = vmatpush1.bf16.msra.mxu0 0
    %296 = vmatprep.subr.bf16.mxu0 0
    %297 = vmatpush1.bf16.msra.mxu0 0
    %298 = vmatprep.subr.bf16.mxu0 0
    %299 = vmatpush1.bf16.msra.mxu0 0
    %300 = vmatprep.subr.bf16.mxu0 0
    %301 = vmatpush1.bf16.msra.mxu0 0
    %302 = vmatprep.subr.bf16.mxu0 0
    %303 = vmatpush1.bf16.msra.mxu0 0
    %304 = vmatprep.subr.bf16.mxu0 0
    %305 = vmatpush1.bf16.msra.mxu0 0
    %306 = vmatprep.subr.bf16.mxu0 0
    %307 = vmatpush1.bf16.msra.mxu0 0
    %308 = vmatprep.subr.bf16.mxu0 0
    %309 = vmatpush1.bf16.msra.mxu0 0
    %310 = vmatprep.subr.bf16.mxu0 0
    %311 = vmatpush1.bf16.msra.mxu0 0
    %312 = vmatprep.mubr.bf16.mxu0 0
    %313 = vmatmul.mubr.bf16.gmra.mrb[0].mxu0 %v275
    %v314 = vpop.f32.mrb[0].mxu0
    %v315 = vadd.f32 0.0, %v314
    %v316 = vpop.f32.mrb[0].mxu0
    %v317 = vadd.f32 0.0, %v316
    %v318 = vpop.f32.mrb[0].mxu0
    %v319 = vadd.f32 0.0, %v318
    %v320 = vpop.f32.mrb[0].mxu0
    %v321 = vadd.f32 0.0, %v320
    %322 = vmatprep.mubr.bf16.mxu0 0
    %323 = vmatmul.mubr.bf16.gmra.mrb[0].mxu0 %v278
    %v324 = vpop.f32.mrb[0].mxu0
    %v325 = vadd.f32 0.0, %v324
    %v326 = vpop.f32.mrb[0].mxu0
    %v327 = vadd.f32 0.0, %v326
    %v328 = vpop.f32.mrb[0].mxu0
    %v329 = vadd.f32 0.0, %v328
    %v330 = vpop.f32.mrb[0].mxu0
    %v331 = vadd.f32 0.0, %v330
    %332 = vdwg.mxu0
    %333 = vmatprep.subr.bf16.mxu0 0
    %334 = vmatpush1.bf16.msra.mxu0 %v252
    %335 = vmatprep.subr.bf16.mxu0 0
    %336 = vmatpush1.bf16.msra.mxu0 %v255
    %337 = vmatprep.subr.bf16.mxu0 0
    %338 = vmatpush1.bf16.msra.mxu0 %v258
    %339 = vmatprep.subr.bf16.mxu0 0
    %340 = vmatpush1.bf16.msra.mxu0 %v261
    %341 = vmatprep.subr.bf16.mxu0 0
    %342 = vmatpush1.bf16.msra.mxu0 0
    %343 = vmatprep.subr.bf16.mxu0 0
    %344 = vmatpush1.bf16.msra.mxu0 0
    %345 = vmatprep.subr.bf16.mxu0 0
    %346 = vmatpush1.bf16.msra.mxu0 0
    %347 = vmatprep.subr.bf16.mxu0 0
    %348 = vmatpush1.bf16.msra.mxu0 0
    %349 = vmatprep.subr.bf16.mxu0 0
    %350 = vmatpush1.bf16.msra.mxu0 0
    %351 = vmatprep.subr.bf16.mxu0 0
    %352 = vmatpush1.bf16.msra.mxu0 0
    %353 = vmatprep.subr.bf16.mxu0 0
    %354 = vmatpush1.bf16.msra.mxu0 0
    %355 = vmatprep.subr.bf16.mxu0 0
    %356 = vmatpush1.bf16.msra.mxu0 0
    %357 = vmatprep.subr.bf16.mxu0 0
    %358 = vmatpush1.bf16.msra.mxu0 0
    %359 = vmatprep.subr.bf16.mxu0 0
    %360 = vmatpush1.bf16.msra.mxu0 0
    %361 = vmatprep.subr.bf16.mxu0 0
    %362 = vmatpush1.bf16.msra.mxu0 0
    %363 = vmatprep.subr.bf16.mxu0 0
    %364 = vmatpush1.bf16.msra.mxu0 0
    %365 = vmatprep.mubr.bf16.mxu0 0
    %366 = vmatmul.mubr.bf16.gmra.mrb[0].mxu0 %v275
    %v367 = vpop.f32.mrb[0].mxu0
    %v368 = vadd.f32 0.0, %v367
    %v369 = vpop.f32.mrb[0].mxu0
    %v370 = vpop.f32.mrb[0].mxu0
    %v371 = vadd.f32 0.0, %v370
    %v372 = vpop.f32.mrb[0].mxu0
    %373 = vmatprep.mubr.bf16.mxu0 0
    %374 = vmatmul.mubr.bf16.gmra.mrb[0].mxu0 %v278
    %v375 = vpop.f32.mrb[0].mxu0
    %v376 = vadd.f32 0.0, %v375
    %v377 = vpop.f32.mrb[0].mxu0
    %v378 = vpop.f32.mrb[0].mxu0
    %v379 = vadd.f32 0.0, %v378
    %v380 = vpop.f32.mrb[0].mxu0
    %381 = vdwg.mxu0
    %v382 = vlaneseq
    %v383 = vshrl.u32 %v382, 7
    %v384 = vsub.s32 0, %v383
    %v385 = vrot.slane %v76, %v384
    %v386 = vadd.f32 %v315, %v385
    %v387 = vadd.f32 %v319, %v385
    %v388 = vadd.f32 %v325, %v385
    %v389 = vadd.f32 %v329, %v385
    %v390 = vlaneseq
    %v391 = vshrl.u32 %v390, 7
    %v392 = vsub.s32 0, %v391
    %v393 = vrot.slane %v77, %v392
    %v394 = vadd.f32 %v317, %v393
    %v395 = vadd.f32 %v321, %v393
    %v396 = vadd.f32 %v327, %v393
    %v397 = vadd.f32 %v331, %v393
    %v398 = vlaneseq
    %v399 = vshrl.u32 %v398, 7
    %v400 = vsub.s32 0, %v399
    %v401 = vrot.slane %v78, %v400
    %v402 = vadd.f32 %v368, %v401
    %v403 = vadd.f32 %v371, %v401
    %v404 = vadd.f32 %v376, %v401
    %v405 = vadd.f32 %v379, %v401
    %v406 = vpack.c.bf16 %v387, %v386
    %v407 = vpack.c.bf16 %v389, %v388
    %v408 = vpack.c.bf16 %v395, %v394
    %v409 = vpack.c.bf16 %v397, %v396
    %v411 = vsel %vm132, %v406, 0
    %v414 = vsel %vm132, %v408, 0
    %416 = vmatprep.subr.bf16.mxu0 0
    %417 = vmatpush1.bf16.xpose.msra.mxu0 %v414
    %418 = vmatprep.subr.bf16.mxu0 0
    %419 = vmatpush1.bf16.xpose.msra.mxu0 0
    %420 = vmatprep.subr.bf16.mxu0 0
    %421 = vmatpush1.bf16.xpose.msra.mxu0 0
    %422 = vmatprep.subr.bf16.mxu0 0
    %423 = vmatpush1.bf16.xpose.msra.mxu0 0
    %424 = vmatprep.subr.bf16.mxu0 0
    %425 = vmatpush1.bf16.xpose.msra.mxu0 0
    %426 = vmatprep.subr.bf16.mxu0 0
    %427 = vmatpush1.bf16.xpose.msra.mxu0 0
    %428 = vmatprep.subr.bf16.mxu0 0
    %429 = vmatpush1.bf16.xpose.msra.mxu0 0
    %430 = vmatprep.subr.bf16.mxu0 0
    %431 = vmatpush1.bf16.xpose.msra.mxu0 0
    %432 = vmatprep.subr.bf16.mxu0 0
    %433 = vmatpush1.bf16.xpose.msra.mxu0 0
    %434 = vmatprep.subr.bf16.mxu0 0
    %435 = vmatpush1.bf16.xpose.msra.mxu0 0
    %436 = vmatprep.subr.bf16.mxu0 0
    %437 = vmatpush1.bf16.xpose.msra.mxu0 0
    %438 = vmatprep.subr.bf16.mxu0 0
    %439 = vmatpush1.bf16.xpose.msra.mxu0 0
    %440 = vmatprep.subr.bf16.mxu0 0
    %441 = vmatpush1.bf16.xpose.msra.mxu0 0
    %442 = vmatprep.subr.bf16.mxu0 0
    %443 = vmatpush1.bf16.xpose.msra.mxu0 0
    %444 = vmatprep.subr.bf16.mxu0 0
    %445 = vmatpush1.bf16.xpose.msra.mxu0 0
    %446 = vmatprep.subr.bf16.mxu0 0
    %447 = vmatpush1.bf16.xpose.msra.mxu0 0
    %448 = vmatprep.mubr.bf16.mxu0 0
    %449 = vmatmul.mubr.bf16.gmra.mrb[0].mxu0 %v411
    %v450 = vpop.f32.mrb[0].mxu0
    %v451 = vadd.f32 0.0, %v450
    %v452 = vpop.f32.mrb[0].mxu0
    %v453 = vpop.f32.mrb[0].mxu0
    %v454 = vadd.f32 0.0, %v453
    %v455 = vpop.f32.mrb[0].mxu0
    %456 = vdwg.mxu0
    %v458 = vsel %vm132, %v407, 0
    %v461 = vsel %vm132, %v409, 0
    %463 = vmatprep.subr.bf16.mxu0 0
    %464 = vmatpush1.bf16.xpose.msra.mxu0 %v461
    %465 = vmatprep.subr.bf16.mxu0 0
    %466 = vmatpush1.bf16.xpose.msra.mxu0 0
    %467 = vmatprep.subr.bf16.mxu0 0
    %468 = vmatpush1.bf16.xpose.msra.mxu0 0
    %469 = vmatprep.subr.bf16.mxu0 0
    %470 = vmatpush1.bf16.xpose.msra.mxu0 0
    %471 = vmatprep.subr.bf16.mxu0 0
    %472 = vmatpush1.bf16.xpose.msra.mxu0 0
    %473 = vmatprep.subr.bf16.mxu0 0
    %474 = vmatpush1.bf16.xpose.msra.mxu0 0
    %475 = vmatprep.subr.bf16.mxu0 0
    %476 = vmatpush1.bf16.xpose.msra.mxu0 0
    %477 = vmatprep.subr.bf16.mxu0 0
    %478 = vmatpush1.bf16.xpose.msra.mxu0 0
    %479 = vmatprep.subr.bf16.mxu0 0
    %480 = vmatpush1.bf16.xpose.msra.mxu0 0
    %481 = vmatprep.subr.bf16.mxu0 0
    %482 = vmatpush1.bf16.xpose.msra.mxu0 0
    %483 = vmatprep.subr.bf16.mxu0 0
    %484 = vmatpush1.bf16.xpose.msra.mxu0 0
    %485 = vmatprep.subr.bf16.mxu0 0
    %486 = vmatpush1.bf16.xpose.msra.mxu0 0
    %487 = vmatprep.subr.bf16.mxu0 0
    %488 = vmatpush1.bf16.xpose.msra.mxu0 0
    %489 = vmatprep.subr.bf16.mxu0 0
    %490 = vmatpush1.bf16.xpose.msra.mxu0 0
    %491 = vmatprep.subr.bf16.mxu0 0
    %492 = vmatpush1.bf16.xpose.msra.mxu0 0
    %493 = vmatprep.subr.bf16.mxu0 0
    %494 = vmatpush1.bf16.xpose.msra.mxu0 0
    %495 = vmatprep.mubr.bf16.mxu0 0
    %496 = vmatmul.mubr.bf16.gmra.mrb[0].mxu0 %v458
    %v497 = vpop.f32.mrb[0].mxu0
    %v498 = vadd.f32 0.0, %v497
    %v499 = vpop.f32.mrb[0].mxu0
    %v500 = vpop.f32.mrb[0].mxu0
    %v501 = vadd.f32 0.0, %v500
    %v502 = vpop.f32.mrb[0].mxu0
    %503 = vdwg.mxu0
    %v504 = vmul.f32 %v451, 0.125
    %v505 = vmul.f32 %v454, 0.125
    %v506 = vmul.f32 %v498, 0.125
    %v507 = vmul.f32 %v501, 0.125
    %vm508 = vcmask 130048
    %v509 = vsel %vm508, %v504, -inf
    %510 = vmax.xlane.f32.xlu0 %v509
    %v511 = vpop.xlane.xlu0 %510
    %v512 = vsel %vm508, %v505, -inf
    %513 = vmax.xlane.f32.xlu0 %v512
    %v514 = vpop.xlane.xlu0 %513
    %v515 = vsel %vm508, %v506, -inf
    %516 = vmax.xlane.f32.xlu0 %v515
    %v517 = vpop.xlane.xlu0 %516
    %v518 = vsel %vm508, %v507, -inf
    %519 = vmax.xlane.f32.xlu0 %v518
    %v520 = vpop.xlane.xlu0 %519
    %v521 = vsub.f32 %v504, %v511
    %v522 = vsub.f32 %v505, %v514
    %v523 = vsub.f32 %v506, %v517
    %v524 = vsub.f32 %v507, %v520
    %v525 = vmul.f32 %v521, 1.442695
    %v526 = vpow.pop %v525
    %v527 = vmul.f32 %v522, 1.442695
    %v528 = vpow.pop %v527
    %v529 = vmul.f32 %v523, 1.442695
    %v530 = vpow.pop %v529
    %v531 = vmul.f32 %v524, 1.442695
    %v532 = vpow.pop %v531
    %v533 = vsel %vm508, %v526, 0.0
    %534 = vadd.xlane.f32.xlu0 %v533
    %v535 = vpop.xlane.xlu0 %534
    %v536 = vsel %vm508, %v528, 0.0
    %537 = vadd.xlane.f32.xlu0 %v536
    %v538 = vpop.xlane.xlu0 %537
    %v539 = vsel %vm508, %v530, 0.0
    %540 = vadd.xlane.f32.xlu0 %v539
    %v541 = vpop.xlane.xlu0 %540
    %v542 = vsel %vm508, %v532, 0.0
    %543 = vadd.xlane.f32.xlu0 %v542
    %v544 = vpop.xlane.xlu0 %543
    %v545 = vrcp.pop %v535
    %v546 = vrcp.pop %v538
    %v547 = vrcp.pop %v541
    %v548 = vrcp.pop %v544
    %v549 = vmul.f32 %v526, %v545
    %v550 = vmul.f32 %v528, %v546
    %v551 = vmul.f32 %v530, %v547
    %v552 = vmul.f32 %v532, %v548
    %v553 = vpack.c.bf16 %v550, %v549
    %v554 = vpack.c.bf16 %v552, %v551
    %v555 = vpack.c.bf16 %v403, %v402
    %v556 = vpack.c.bf16 %v405, %v404
    %v558 = vsel %vm508, %v553, 0
    %560 = vmatprep.subr.bf16.mxu0 0
    %561 = vmatpush1.bf16.msra.mxu0 %v555
    %562 = vmatprep.subr.bf16.mxu0 0
    %563 = vmatpush1.bf16.msra.mxu0 0
    %564 = vmatprep.subr.bf16.mxu0 0
    %565 = vmatpush1.bf16.msra.mxu0 0
    %566 = vmatprep.subr.bf16.mxu0 0
    %567 = vmatpush1.bf16.msra.mxu0 0
    %568 = vmatprep.subr.bf16.mxu0 0
    %569 = vmatpush1.bf16.msra.mxu0 0
    %570 = vmatprep.subr.bf16.mxu0 0
    %571 = vmatpush1.bf16.msra.mxu0 0
    %572 = vmatprep.subr.bf16.mxu0 0
    %573 = vmatpush1.bf16.msra.mxu0 0
    %574 = vmatprep.subr.bf16.mxu0 0
    %575 = vmatpush1.bf16.msra.mxu0 0
    %576 = vmatprep.subr.bf16.mxu0 0
    %577 = vmatpush1.bf16.msra.mxu0 0
    %578 = vmatprep.subr.bf16.mxu0 0
    %579 = vmatpush1.bf16.msra.mxu0 0
    %580 = vmatprep.subr.bf16.mxu0 0
    %581 = vmatpush1.bf16.msra.mxu0 0
    %582 = vmatprep.subr.bf16.mxu0 0
    %583 = vmatpush1.bf16.msra.mxu0 0
    %584 = vmatprep.subr.bf16.mxu0 0
    %585 = vmatpush1.bf16.msra.mxu0 0
    %586 = vmatprep.subr.bf16.mxu0 0
    %587 = vmatpush1.bf16.msra.mxu0 0
    %588 = vmatprep.subr.bf16.mxu0 0
    %589 = vmatpush1.bf16.msra.mxu0 0
    %590 = vmatprep.subr.bf16.mxu0 0
    %591 = vmatpush1.bf16.msra.mxu0 0
    %592 = vmatprep.mubr.bf16.mxu0 0
    %593 = vmatmul.mubr.bf16.gmra.mrb[0].mxu0 %v558
    %v594 = vpop.f32.mrb[0].mxu0
    %v595 = vadd.f32 0.0, %v594
    %v596 = vpop.f32.mrb[0].mxu0
    %v597 = vpop.f32.mrb[0].mxu0
    %v598 = vadd.f32 0.0, %v597
    %v599 = vpop.f32.mrb[0].mxu0
    %600 = vdwg.mxu0
    %v602 = vsel %vm508, %v554, 0
    %604 = vmatprep.subr.bf16.mxu0 0
    %605 = vmatpush1.bf16.msra.mxu0 %v556
    %606 = vmatprep.subr.bf16.mxu0 0
    %607 = vmatpush1.bf16.msra.mxu0 0
    %608 = vmatprep.subr.bf16.mxu0 0
    %609 = vmatpush1.bf16.msra.mxu0 0
    %610 = vmatprep.subr.bf16.mxu0 0
    %611 = vmatpush1.bf16.msra.mxu0 0
    %612 = vmatprep.subr.bf16.mxu0 0
    %613 = vmatpush1.bf16.msra.mxu0 0
    %614 = vmatprep.subr.bf16.mxu0 0
    %615 = vmatpush1.bf16.msra.mxu0 0
    %616 = vmatprep.subr.bf16.mxu0 0
    %617 = vmatpush1.bf16.msra.mxu0 0
    %618 = vmatprep.subr.bf16.mxu0 0
    %619 = vmatpush1.bf16.msra.mxu0 0
    %620 = vmatprep.subr.bf16.mxu0 0
    %621 = vmatpush1.bf16.msra.mxu0 0
    %622 = vmatprep.subr.bf16.mxu0 0
    %623 = vmatpush1.bf16.msra.mxu0 0
    %624 = vmatprep.subr.bf16.mxu0 0
    %625 = vmatpush1.bf16.msra.mxu0 0
    %626 = vmatprep.subr.bf16.mxu0 0
    %627 = vmatpush1.bf16.msra.mxu0 0
    %628 = vmatprep.subr.bf16.mxu0 0
    %629 = vmatpush1.bf16.msra.mxu0 0
    %630 = vmatprep.subr.bf16.mxu0 0
    %631 = vmatpush1.bf16.msra.mxu0 0
    %632 = vmatprep.subr.bf16.mxu0 0
    %633 = vmatpush1.bf16.msra.mxu0 0
    %634 = vmatprep.subr.bf16.mxu0 0
    %635 = vmatpush1.bf16.msra.mxu0 0
    %636 = vmatprep.mubr.bf16.mxu0 0
    %637 = vmatmul.mubr.bf16.gmra.mrb[0].mxu0 %v602
    %v638 = vpop.f32.mrb[0].mxu0
    %v639 = vadd.f32 0.0, %v638
    %v640 = vpop.f32.mrb[0].mxu0
    %v641 = vpop.f32.mrb[0].mxu0
    %v642 = vadd.f32 0.0, %v641
    %v643 = vpop.f32.mrb[0].mxu0
    %644 = vdwg.mxu0
    %v645 = vpack.c.bf16 %v598, %v595
    %v646 = vpack.c.bf16 %v642, %v639
    %v647 = vld [vmem:[#allocation5] sm:$0xf]
    %v648 = vld [vmem:[#allocation5 + $0x4] sm:$0xf]
    %v649 = vld [vmem:[#allocation5 + $0x8] sm:$0xf]
    %v650 = vld [vmem:[#allocation5 + $0xc] sm:$0xf]
    %v651 = vld [vmem:[#allocation5 + $0x10] sm:$0xf]
    %v652 = vld [vmem:[#allocation5 + $0x14] sm:$0xf]
    %v653 = vld [vmem:[#allocation5 + $0x18] sm:$0xf]
    %v654 = vld [vmem:[#allocation5 + $0x1c] sm:$0xf]
    %v655 = vlaneseq
    %v656 = vshrl.u32 %v655, 7
    %v657 = vsub.s32 0, %v656
    %v658 = vrot.slane %v79, %v657
    %v667 = vunpack.c.l.b16 %v647
    %v668 = vunpack.c.l.b16 %v648
    %v669 = vunpack.c.l.b16 %v649
    %v670 = vunpack.c.l.b16 %v650
    %v671 = vunpack.c.l.b16 %v651
    %v672 = vunpack.c.l.b16 %v652
    %v673 = vunpack.c.l.b16 %v653
    %v674 = vunpack.c.l.b16 %v654
    %v675 = vpack.c.b16 %v668, %v667
    %v676 = vpack.c.b16 %v670, %v669
    %v677 = vpack.c.b16 %v672, %v671
    %v678 = vpack.c.b16 %v674, %v673
    %v684 = vsel %vm132, %v645, 0
    %v687 = vsel %vm132, %v646, 0
    %689 = vmatprep.subr.bf16.mxu0 0
    %690 = vmatpush1.bf16.msra.mxu0 %v675
    %691 = vmatprep.subr.bf16.mxu0 0
    %692 = vmatpush1.bf16.msra.mxu0 %v676
    %693 = vmatprep.subr.bf16.mxu0 0
    %694 = vmatpush1.bf16.msra.mxu0 %v677
    %695 = vmatprep.subr.bf16.mxu0 0
    %696 = vmatpush1.bf16.msra.mxu0 %v678
    %697 = vmatprep.subr.bf16.mxu0 0
    %698 = vmatpush1.bf16.msra.mxu0 0
    %699 = vmatprep.subr.bf16.mxu0 0
    %700 = vmatpush1.bf16.msra.mxu0 0
    %701 = vmatprep.subr.bf16.mxu0 0
    %702 = vmatpush1.bf16.msra.mxu0 0
    %703 = vmatprep.subr.bf16.mxu0 0
    %704 = vmatpush1.bf16.msra.mxu0 0
    %705 = vmatprep.subr.bf16.mxu0 0
    %706 = vmatpush1.bf16.msra.mxu0 0
    %707 = vmatprep.subr.bf16.mxu0 0
    %708 = vmatpush1.bf16.msra.mxu0 0
    %709 = vmatprep.subr.bf16.mxu0 0
    %710 = vmatpush1.bf16.msra.mxu0 0
    %711 = vmatprep.subr.bf16.mxu0 0
    %712 = vmatpush1.bf16.msra.mxu0 0
    %713 = vmatprep.subr.bf16.mxu0 0
    %714 = vmatpush1.bf16.msra.mxu0 0
    %715 = vmatprep.subr.bf16.mxu0 0
    %716 = vmatpush1.bf16.msra.mxu0 0
    %717 = vmatprep.subr.bf16.mxu0 0
    %718 = vmatpush1.bf16.msra.mxu0 0
    %719 = vmatprep.subr.bf16.mxu0 0
    %720 = vmatpush1.bf16.msra.mxu0 0
    %721 = vmatprep.mubr.bf16.mxu0 0
    %722 = vmatmul.mubr.bf16.gmra.mrb[0].mxu0 %v684
    %v723 = vpop.f32.mrb[0].mxu0
    %v724 = vadd.f32 %v658, %v723
    %v725 = vpop.f32.mrb[0].mxu0
    %v726 = vpop.f32.mrb[0].mxu0
    %v727 = vadd.f32 %v658, %v726
    %v728 = vpop.f32.mrb[0].mxu0
    %729 = vmatprep.mubr.bf16.mxu0 0
    %730 = vmatmul.mubr.bf16.gmra.mrb[0].mxu0 %v687
    %v731 = vpop.f32.mrb[0].mxu0
    %v732 = vadd.f32 %v658, %v731
    %v733 = vpop.f32.mrb[0].mxu0
    %v734 = vpop.f32.mrb[0].mxu0
    %v735 = vadd.f32 %v658, %v734
    %v736 = vpop.f32.mrb[0].mxu0
    %737 = vdwg.mxu0
    %v738 = vadd.f32 %v188, %v724
    %v739 = vadd.f32 %v189, %v727
    %v740 = vadd.f32 %v190, %v732
    %v741 = vadd.f32 %v191, %v735
    %v742 = vsel %vm132, %v738, 0.0
    %743 = vadd.xlane.f32.xlu0 %v742
    %v744 = vpop.xlane.xlu0 %743
    %v745 = vsel %vm132, %v739, 0.0
    %746 = vadd.xlane.f32.xlu0 %v745
    %v747 = vpop.xlane.xlu0 %746
    %v748 = vsel %vm132, %v740, 0.0
    %749 = vadd.xlane.f32.xlu0 %v748
    %v750 = vpop.xlane.xlu0 %749
    %v751 = vsel %vm132, %v741, 0.0
    %752 = vadd.xlane.f32.xlu0 %v751
    %v753 = vpop.xlane.xlu0 %752
    %v754 = vrcp.pop 64.0
    %v755 = vmul.f32 %v744, %v754
    %v756 = vmul.f32 %v747, %v754
    %v757 = vmul.f32 %v750, %v754
    %v758 = vmul.f32 %v753, %v754
    %v759 = vsub.f32 %v738, %v755
    %v760 = vsub.f32 %v739, %v756
    %v761 = vsub.f32 %v740, %v757
    %v762 = vsub.f32 %v741, %v758
    %v763 = vmul.f32 %v759, %v759
    %v764 = vmul.f32 %v760, %v760
    %v765 = vmul.f32 %v761, %v761
    %v766 = vmul.f32 %v762, %v762
    %v767 = vsel %vm132, %v763, 0.0
    %768 = vadd.xlane.f32.xlu0 %v767
    %v769 = vpop.xlane.xlu0 %768
    %v770 = vsel %vm132, %v764, 0.0
    %771 = vadd.xlane.f32.xlu0 %v770
    %v772 = vpop.xlane.xlu0 %771
    %v773 = vsel %vm132, %v765, 0.0
    %774 = vadd.xlane.f32.xlu0 %v773
    %v775 = vpop.xlane.xlu0 %774
    %v776 = vsel %vm132, %v766, 0.0
    %777 = vadd.xlane.f32.xlu0 %v776
    %v778 = vpop.xlane.xlu0 %777
    %v779 = vmul.f32 %v769, %v754
    %v780 = vmul.f32 %v772, %v754
    %v781 = vmul.f32 %v775, %v754
    %v782 = vmul.f32 %v778, %v754
    %v783 = vadd.f32 %v779, 1e-05
    %v784 = vadd.f32 %v780, 1e-05
    %v785 = vadd.f32 %v781, 1e-05
    %v786 = vadd.f32 %v782, 1e-05
    %v787 = vrsqrt.pop %v783
    %v788 = vrsqrt.pop %v784
    %v789 = vrsqrt.pop %v785
    %v790 = vrsqrt.pop %v786
    %v791 = vmul.f32 %v759, %v787
    %v792 = vmul.f32 %v760, %v788
    %v793 = vmul.f32 %v761, %v789
    %v794 = vmul.f32 %v762, %v790
    %v795 = vlaneseq
    %v796 = vshrl.u32 %v795, 7
    %v797 = vsub.s32 0, %v796
    %v798 = vrot.slane %v80, %v797
    %v799 = vmul.f32 %v791, %v798
    %v800 = vmul.f32 %v792, %v798
    %v801 = vmul.f32 %v793, %v798
    %v802 = vmul.f32 %v794, %v798
    %v803 = vlaneseq
    %v804 = vshrl.u32 %v803, 7
    %v805 = vsub.s32 0, %v804
    %v806 = vrot.slane %v81, %v805
    %v807 = vadd.f32 %v799, %v806
    %v808 = vadd.f32 %v800, %v806
    %v809 = vadd.f32 %v801, %v806
    %v810 = vadd.f32 %v802, %v806
    %v811 = vpack.c.bf16 %v808, %v807
    %v812 = vpack.c.bf16 %v810, %v809
    %v813 = vld [vmem:[%s4] sm:$0xf]
    %v814 = vld [vmem:[%s4 + $0x4] sm:$0xf]
    %v815 = vld [vmem:[%s4 + $0x8] sm:$0xf]
    %v816 = vld [vmem:[%s4 + $0xc] sm:$0xf]
    %v817 = vld [vmem:[%s4 + $0x10] sm:$0xf]
    %v818 = vld [vmem:[%s4 + $0x14] sm:$0xf]
    %v819 = vld [vmem:[%s4 + $0x18] sm:$0xf]
    %v820 = vld [vmem:[%s4 + $0x1c] sm:$0xf]
    %v821 = vlaneseq
    %v822 = vshrl.u32 %v821, 7
    %v823 = vsub.s32 0, %v822
    %v824 = vrot.slane %v82, %v823
    %v833 = vunpack.c.l.b16 %v813
    %v834 = vunpack.c.l.b16 %v814
    %v835 = vunpack.c.l.b16 %v815
    %v836 = vunpack.c.l.b16 %v816
    %v837 = vunpack.c.l.b16 %v817
    %v838 = vunpack.c.l.b16 %v818
    %v839 = vunpack.c.l.b16 %v819
    %v840 = vunpack.c.l.b16 %v820
    %v841 = vpack.c.b16 %v834, %v833
    %v842 = vpack.c.b16 %v836, %v835
    %v843 = vpack.c.b16 %v838, %v837
    %v844 = vpack.c.b16 %v840, %v839
    %v850 = vsel %vm132, %v811, 0
    %v853 = vsel %vm132, %v812, 0
    %855 = vmatprep.subr.bf16.mxu0 0
    %856 = vmatpush1.bf16.msra.mxu0 %v841
    %857 = vmatprep.subr.bf16.mxu0 0
    %858 = vmatpush1.bf16.msra.mxu0 %v842
    %859 = vmatprep.subr.bf16.mxu0 0
    %860 = vmatpush1.bf16.msra.mxu0 %v843
    %861 = vmatprep.subr.bf16.mxu0 0
    %862 = vmatpush1.bf16.msra.mxu0 %v844
    %863 = vmatprep.subr.bf16.mxu0 0
    %864 = vmatpush1.bf16.msra.mxu0 0
    %865 = vmatprep.subr.bf16.mxu0 0
    %866 = vmatpush1.bf16.msra.mxu0 0
    %867 = vmatprep.subr.bf16.mxu0 0
    %868 = vmatpush1.bf16.msra.mxu0 0
    %869 = vmatprep.subr.bf16.mxu0 0
    %870 = vmatpush1.bf16.msra.mxu0 0
    %871 = vmatprep.subr.bf16.mxu0 0
    %872 = vmatpush1.bf16.msra.mxu0 0
    %873 = vmatprep.subr.bf16.mxu0 0
    %874 = vmatpush1.bf16.msra.mxu0 0
    %875 = vmatprep.subr.bf16.mxu0 0
    %876 = vmatpush1.bf16.msra.mxu0 0
    %877 = vmatprep.subr.bf16.mxu0 0
    %878 = vmatpush1.bf16.msra.mxu0 0
    %879 = vmatprep.subr.bf16.mxu0 0
    %880 = vmatpush1.bf16.msra.mxu0 0
    %881 = vmatprep.subr.bf16.mxu0 0
    %882 = vmatpush1.bf16.msra.mxu0 0
    %883 = vmatprep.subr.bf16.mxu0 0
    %884 = vmatpush1.bf16.msra.mxu0 0
    %885 = vmatprep.subr.bf16.mxu0 0
    %886 = vmatpush1.bf16.msra.mxu0 0
    %887 = vmatprep.mubr.bf16.mxu0 0
    %888 = vmatmul.mubr.bf16.gmra.mrb[0].mxu0 %v850
    %v889 = vpop.f32.mrb[0].mxu0
    %v890 = vadd.f32 %v824, %v889
    %v891 = vpop.f32.mrb[0].mxu0
    %v892 = vpop.f32.mrb[0].mxu0
    %v893 = vadd.f32 %v824, %v892
    %v894 = vpop.f32.mrb[0].mxu0
    %895 = vmatprep.mubr.bf16.mxu0 0
    %896 = vmatmul.mubr.bf16.gmra.mrb[0].mxu0 %v853
    %v897 = vpop.f32.mrb[0].mxu0
    %v898 = vadd.f32 %v824, %v897
    %v899 = vpop.f32.mrb[0].mxu0
    %v900 = vpop.f32.mrb[0].mxu0
    %v901 = vadd.f32 %v824, %v900
    %v902 = vpop.f32.mrb[0].mxu0
    %903 = vdwg.mxu0
    %v904 = vmax.f32 %v890, 0.0
    %v905 = vmax.f32 %v893, 0.0
    %v906 = vmax.f32 %v898, 0.0
    %v907 = vmax.f32 %v901, 0.0
    %v908 = vpack.c.bf16 %v905, %v904
    %v909 = vpack.c.bf16 %v907, %v906
    %v910 = vld [vmem:[%s5] sm:$0xf]
    %v911 = vld [vmem:[%s5 + $0x4] sm:$0xf]
    %v912 = vld [vmem:[%s5 + $0x8] sm:$0xf]
    %v913 = vld [vmem:[%s5 + $0xc] sm:$0xf]
    %v914 = vld [vmem:[%s5 + $0x10] sm:$0xf]
    %v915 = vld [vmem:[%s5 + $0x14] sm:$0xf]
    %v916 = vld [vmem:[%s5 + $0x18] sm:$0xf]
    %v917 = vld [vmem:[%s5 + $0x1c] sm:$0xf]
    %v918 = vld [vmem:[%s5 + $0x20] sm:$0xf]
    %v919 = vld [vmem:[%s5 + $0x24] sm:$0xf]
    %v920 = vld [vmem:[%s5 + $0x28] sm:$0xf]
    %v921 = vld [vmem:[%s5 + $0x2c] sm:$0xf]
    %v922 = vld [vmem:[%s5 + $0x30] sm:$0xf]
    %v923 = vld [vmem:[%s5 + $0x34] sm:$0xf]
    %v924 = vld [vmem:[%s5 + $0x38] sm:$0xf]
    %v925 = vld [vmem:[%s5 + $0x3c] sm:$0xf]
    %v926 = vlaneseq
    %v927 = vshrl.u32 %v926, 7
    %v928 = vsub.s32 0, %v927
    %v929 = vrot.slane %v83, %v928
    %v946 = vunpack.c.l.b16 %v910
    %v947 = vunpack.c.l.b16 %v911
    %v948 = vunpack.c.l.b16 %v912
    %v949 = vunpack.c.l.b16 %v913
    %v950 = vunpack.c.l.b16 %v914
    %v951 = vunpack.c.l.b16 %v915
    %v952 = vunpack.c.l.b16 %v916
    %v953 = vunpack.c.l.b16 %v917
    %v954 = vunpack.c.l.b16 %v918
    %v955 = vunpack.c.l.b16 %v919
    %v956 = vunpack.c.l.b16 %v920
    %v957 = vunpack.c.l.b16 %v921
    %v958 = vunpack.c.l.b16 %v922
    %v959 = vunpack.c.l.b16 %v923
    %v960 = vunpack.c.l.b16 %v924
    %v961 = vunpack.c.l.b16 %v925
    %v962 = vpack.c.b16 %v947, %v946
    %v963 = vpack.c.b16 %v949, %v948
    %v964 = vpack.c.b16 %v951, %v950
    %v965 = vpack.c.b16 %v953, %v952
    %v966 = vpack.c.b16 %v955, %v954
    %v967 = vpack.c.b16 %v957, %v956
    %v968 = vpack.c.b16 %v959, %v958
    %v969 = vpack.c.b16 %v961, %v960
    %978 = vmatprep.subr.bf16.mxu0 0
    %979 = vmatpush1.bf16.msra.mxu0 %v962
    %980 = vmatprep.subr.bf16.mxu0 0
    %981 = vmatpush1.bf16.msra.mxu0 %v963
    %982 = vmatprep.subr.bf16.mxu0 0
    %983 = vmatpush1.bf16.msra.mxu0 %v964
    %984 = vmatprep.subr.bf16.mxu0 0
    %985 = vmatpush1.bf16.msra.mxu0 %v965
    %986 = vmatprep.subr.bf16.mxu0 0
    %987 = vmatpush1.bf16.msra.mxu0 %v966
    %988 = vmatprep.subr.bf16.mxu0 0
    %989 = vmatpush1.bf16.msra.mxu0 %v967
    %990 = vmatprep.subr.bf16.mxu0 0
    %991 = vmatpush1.bf16.msra.mxu0 %v968
    %992 = vmatprep.subr.bf16.mxu0 0
    %993 = vmatpush1.bf16.msra.mxu0 %v969
    %994 = vmatprep.subr.bf16.mxu0 0
    %995 = vmatpush1.bf16.msra.mxu0 0
    %996 = vmatprep.subr.bf16.mxu0 0
    %997 = vmatpush1.bf16.msra.mxu0 0
    %998 = vmatprep.subr.bf16.mxu0 0
    %999 = vmatpush1.bf16.msra.mxu0 0
    %1000 = vmatprep.subr.bf16.mxu0 0
    %1001 = vmatpush1.bf16.msra.mxu0 0
    %1002 = vmatprep.subr.bf16.mxu0 0
    %1003 = vmatpush1.bf16.msra.mxu0 0
    %1004 = vmatprep.subr.bf16.mxu0 0
    %1005 = vmatpush1.bf16.msra.mxu0 0
    %1006 = vmatprep.subr.bf16.mxu0 0
    %1007 = vmatpush1.bf16.msra.mxu0 0
    %1008 = vmatprep.subr.bf16.mxu0 0
    %1009 = vmatpush1.bf16.msra.mxu0 0
    %1010 = vmatprep.mubr.bf16.mxu0 0
    %1011 = vmatmul.mubr.bf16.gmra.mrb[0].mxu0 %v908
    %v1012 = vpop.f32.mrb[0].mxu0
    %v1013 = vadd.f32 %v929, %v1012
    %v1014 = vpop.f32.mrb[0].mxu0
    %v1015 = vpop.f32.mrb[0].mxu0
    %v1016 = vadd.f32 %v929, %v1015
    %v1017 = vpop.f32.mrb[0].mxu0
    %1018 = vmatprep.mubr.bf16.mxu0 0
    %1019 = vmatmul.mubr.bf16.gmra.mrb[0].mxu0 %v909
    %v1020 = vpop.f32.mrb[0].mxu0
    %v1021 = vadd.f32 %v929, %v1020
    %v1022 = vpop.f32.mrb[0].mxu0
    %v1023 = vpop.f32.mrb[0].mxu0
    %v1024 = vadd.f32 %v929, %v1023
    %v1025 = vpop.f32.mrb[0].mxu0
    %1026 = vdwg.mxu0
    %v1027 = vadd.f32 %v807, %v1013
    %v1028 = vadd.f32 %v808, %v1016
    %v1029 = vadd.f32 %v809, %v1021
    %v1030 = vadd.f32 %v810, %v1024
    %v1031 = vsel %vm132, %v1027, 0.0
    %1032 = vadd.xlane.f32.xlu0 %v1031
    %v1033 = vpop.xlane.xlu0 %1032
    %v1034 = vsel %vm132, %v1028, 0.0
    %1035 = vadd.xlane.f32.xlu0 %v1034
    %v1036 = vpop.xlane.xlu0 %1035
    %v1037 = vsel %vm132, %v1029, 0.0
    %1038 = vadd.xlane.f32.xlu0 %v1037
    %v1039 = vpop.xlane.xlu0 %1038
    %v1040 = vsel %vm132, %v1030, 0.0
    %1041 = vadd.xlane.f32.xlu0 %v1040
    %v1042 = vpop.xlane.xlu0 %1041
    %v1043 = vmul.f32 %v1033, %v754
    %v1044 = vmul.f32 %v1036, %v754
    %v1045 = vmul.f32 %v1039, %v754
    %v1046 = vmul.f32 %v1042, %v754
    %v1047 = vsub.f32 %v1027, %v1043
    %v1048 = vsub.f32 %v1028, %v1044
    %v1049 = vsub.f32 %v1029, %v1045
    %v1050 = vsub.f32 %v1030, %v1046
    %v1051 = vmul.f32 %v1047, %v1047
    %v1052 = vmul.f32 %v1048, %v1048
    %v1053 = vmul.f32 %v1049, %v1049
    %v1054 = vmul.f32 %v1050, %v1050
    %v1055 = vsel %vm132, %v1051, 0.0
    %1056 = vadd.xlane.f32.xlu0 %v1055
    %v1057 = vpop.xlane.xlu0 %1056
    %v1058 = vsel %vm132, %v1052, 0.0
    %1059 = vadd.xlane.f32.xlu0 %v1058
    %v1060 = vpop.xlane.xlu0 %1059
    %v1061 = vsel %vm132, %v1053, 0.0
    %1062 = vadd.xlane.f32.xlu0 %v1061
    %v1063 = vpop.xlane.xlu0 %1062
    %v1064 = vsel %vm132, %v1054, 0.0
    %1065 = vadd.xlane.f32.xlu0 %v1064
    %v1066 = vpop.xlane.xlu0 %1065
    %v1067 = vmul.f32 %v1057, %v754
    %v1068 = vmul.f32 %v1060, %v754
    %v1069 = vmul.f32 %v1063, %v754
    %v1070 = vmul.f32 %v1066, %v754
    %v1071 = vadd.f32 %v1067, 1e-05
    %v1072 = vadd.f32 %v1068, 1e-05
    %v1073 = vadd.f32 %v1069, 1e-05
    %v1074 = vadd.f32 %v1070, 1e-05
    %v1075 = vrsqrt.pop %v1071
    %v1076 = vrsqrt.pop %v1072
    %v1077 = vrsqrt.pop %v1073
    %v1078 = vrsqrt.pop %v1074
    %v1079 = vmul.f32 %v1047, %v1075
    %v1080 = vmul.f32 %v1048, %v1076
    %v1081 = vmul.f32 %v1049, %v1077
    %v1082 = vmul.f32 %v1050, %v1078
    %v1083 = vlaneseq
    %v1084 = vshrl.u32 %v1083, 7
    %v1085 = vsub.s32 0, %v1084
    %v1086 = vrot.slane %v84, %v1085
    %v1087 = vmul.f32 %v1079, %v1086
    %v1088 = vmul.f32 %v1080, %v1086
    %v1089 = vmul.f32 %v1081, %v1086
    %v1090 = vmul.f32 %v1082, %v1086
    %v1091 = vlaneseq
    %v1092 = vshrl.u32 %v1091, 7
    %v1093 = vsub.s32 0, %v1092
    %v1094 = vrot.slane %v85, %v1093
    %v1095 = vadd.f32 %v1087, %v1094
    %v1096 = vadd.f32 %v1088, %v1094
    %v1097 = vadd.f32 %v1089, %v1094
    %v1098 = vadd.f32 %v1090, %v1094
    %v1099 = vsel %vm132, %v1095, 0.0
    %1100 = vadd.xlane.f32.xlu0 %v1099
    %v1101 = vpop.xlane.xlu0 %1100
    %v1102 = vsel %vm132, %v1096, 0.0
    %1103 = vadd.xlane.f32.xlu0 %v1102
    %v1104 = vpop.xlane.xlu0 %1103
    %v1105 = vsel %vm132, %v1097, 0.0
    %1106 = vadd.xlane.f32.xlu0 %v1105
    %v1107 = vpop.xlane.xlu0 %1106
    %v1108 = vsel %vm132, %v1098, 0.0
    %1109 = vadd.xlane.f32.xlu0 %v1108
    %v1110 = vpop.xlane.xlu0 %1109
    %v1111 = vmul.f32 %v1101, %v754
    %v1112 = vmul.f32 %v1104, %v754
    %v1113 = vmul.f32 %v1107, %v754
    %v1114 = vmul.f32 %v1110, %v754
    %v1115 = vsub.f32 %v1095, %v1111
    %v1116 = vsub.f32 %v1096, %v1112
    %v1117 = vsub.f32 %v1097, %v1113
    %v1118 = vsub.f32 %v1098, %v1114
    %v1119 = vmul.f32 %v1115, %v1115
    %v1120 = vmul.f32 %v1116, %v1116
    %v1121 = vmul.f32 %v1117, %v1117
    %v1122 = vmul.f32 %v1118, %v1118
    %v1123 = vsel %vm132, %v1119, 0.0
    %1124 = vadd.xlane.f32.xlu0 %v1123
    %v1125 = vpop.xlane.xlu0 %1124
    %v1126 = vsel %vm132, %v1120, 0.0
    %1127 = vadd.xlane.f32.xlu0 %v1126
    %v1128 = vpop.xlane.xlu0 %1127
    %v1129 = vsel %vm132, %v1121, 0.0
    %1130 = vadd.xlane.f32.xlu0 %v1129
    %v1131 = vpop.xlane.xlu0 %1130
    %v1132 = vsel %vm132, %v1122, 0.0
    %1133 = vadd.xlane.f32.xlu0 %v1132
    %v1134 = vpop.xlane.xlu0 %1133
    %v1135 = vmul.f32 %v1125, %v754
    %v1136 = vmul.f32 %v1128, %v754
    %v1137 = vmul.f32 %v1131, %v754
    %v1138 = vmul.f32 %v1134, %v754
    %v1139 = vadd.f32 %v1135, 1e-05
    %v1140 = vadd.f32 %v1136, 1e-05
    %v1141 = vadd.f32 %v1137, 1e-05
    %v1142 = vadd.f32 %v1138, 1e-05
    %v1143 = vrsqrt.pop %v1139
    %v1144 = vrsqrt.pop %v1140
    %v1145 = vrsqrt.pop %v1141
    %v1146 = vrsqrt.pop %v1142
    %v1147 = vmul.f32 %v1115, %v1143
    %v1148 = vmul.f32 %v1116, %v1144
    %v1149 = vmul.f32 %v1117, %v1145
    %v1150 = vmul.f32 %v1118, %v1146
    %v1151 = vlaneseq
    %v1152 = vshrl.u32 %v1151, 7
    %v1153 = vsub.s32 0, %v1152
    %v1154 = vrot.slane %v86, %v1153
    %v1155 = vmul.f32 %v1147, %v1154
    %v1156 = vmul.f32 %v1148, %v1154
    %v1157 = vmul.f32 %v1149, %v1154
    %v1158 = vmul.f32 %v1150, %v1154
    %v1159 = vlaneseq
    %v1160 = vshrl.u32 %v1159, 7
    %v1161 = vsub.s32 0, %v1160
    %v1162 = vrot.slane %v87, %v1161
    %v1163 = vadd.f32 %v1155, %v1162
    %v1164 = vadd.f32 %v1156, %v1162
    %v1165 = vadd.f32 %v1157, %v1162
    %v1166 = vadd.f32 %v1158, %v1162
    %v1167 = vsel %vm132, %v1163, -inf
    %v1168 = vsel %vm132, %v1164, -inf
    %v1169 = vmax.f32 %v1167, %v1168
    %v1170 = vrot.slane %v1169, 4
    %v1171 = vmax.f32 %v1169, %v1170
    %v1172 = vrot.slane %v1171, 2
    %v1173 = vmax.f32 %v1171, %v1172
    %v1174 = vrot.slane %v1173, 1
    %v1175 = vmax.f32 %v1173, %v1174
    %v1176 = vsel %vm132, %v1165, -inf
    %v1177 = vsel %vm132, %v1166, -inf
    %v1178 = vmax.f32 %v1176, %v1177
    %v1179 = vrot.slane %v1178, 4
    %v1180 = vmax.f32 %v1178, %v1179
    %v1181 = vrot.slane %v1180, 2
    %v1182 = vmax.f32 %v1180, %v1181
    %v1183 = vrot.slane %v1182, 1
    %v1184 = vmax.f32 %v1182, %v1183
    %v1185 = vmax.f32 %v1175, 0.0
    %v1186 = vmax.f32 %v1184, 0.0
    %v1187 = vpack.c.bf16 %v1185, %v1185
    %v1188 = vpack.c.bf16 %v1186, %v1186
    %v1189 = vld [vmem:[%s6] sm:$0xf]
    %v1190 = vld [vmem:[%s6 + $0x4] sm:$0xf]
    %v1191 = vld [vmem:[%s6 + $0x8] sm:$0xf]
    %v1192 = vld [vmem:[%s6 + $0xc] sm:$0xf]
    %v1193 = vld [vmem:[%s6 + $0x10] sm:$0xf]
    %v1194 = vld [vmem:[%s6 + $0x14] sm:$0xf]
    %v1195 = vld [vmem:[%s6 + $0x18] sm:$0xf]
    %v1196 = vld [vmem:[%s6 + $0x1c] sm:$0xf]
    %v1197 = vlaneseq
    %v1198 = vshrl.u32 %v1197, 7
    %v1199 = vsub.s32 0, %v1198
    %v1200 = vrot.slane %v88, %v1199
    %v1203 = vunpack.c.l.b16 %v1187
    %v1204 = vunpack.c.l.b16 %v1188
    %vm1205 = vcmask 1041409
    %v1206 = vsel %vm1205, %v1204, %v1203
    %v1207 = vpack.c.b16 %v1206, %v1206
    %v1216 = vunpack.c.l.b16 %v1189
    %v1217 = vunpack.c.l.b16 %v1190
    %v1218 = vunpack.c.l.b16 %v1191
    %v1219 = vunpack.c.l.b16 %v1192
    %v1220 = vunpack.c.l.b16 %v1193
    %v1221 = vunpack.c.l.b16 %v1194
    %v1222 = vunpack.c.l.b16 %v1195
    %v1223 = vunpack.c.l.b16 %v1196
    %v1224 = vpack.c.b16 %v1217, %v1216
    %v1225 = vpack.c.b16 %v1219, %v1218
    %v1226 = vpack.c.b16 %v1221, %v1220
    %v1227 = vpack.c.b16 %v1223, %v1222
    %v1233 = vsel %vm132, %v1207, 0
    %1235 = vmatprep.subr.bf16.mxu0 0
    %1236 = vmatpush1.bf16.msra.mxu0 %v1224
    %1237 = vmatprep.subr.bf16.mxu0 0
    %1238 = vmatpush1.bf16.msra.mxu0 %v1225
    %1239 = vmatprep.subr.bf16.mxu0 0
    %1240 = vmatpush1.bf16.msra.mxu0 %v1226
    %1241 = vmatprep.subr.bf16.mxu0 0
    %1242 = vmatpush1.bf16.msra.mxu0 %v1227
    %1243 = vmatprep.subr.bf16.mxu0 0
    %1244 = vmatpush1.bf16.msra.mxu0 0
    %1245 = vmatprep.subr.bf16.mxu0 0
    %1246 = vmatpush1.bf16.msra.mxu0 0
    %1247 = vmatprep.subr.bf16.mxu0 0
    %1248 = vmatpush1.bf16.msra.mxu0 0
    %1249 = vmatprep.subr.bf16.mxu0 0
    %1250 = vmatpush1.bf16.msra.mxu0 0
    %1251 = vmatprep.subr.bf16.mxu0 0
    %1252 = vmatpush1.bf16.msra.mxu0 0
    %1253 = vmatprep.subr.bf16.mxu0 0
    %1254 = vmatpush1.bf16.msra.mxu0 0
    %1255 = vmatprep.subr.bf16.mxu0 0
    %1256 = vmatpush1.bf16.msra.mxu0 0
    %1257 = vmatprep.subr.bf16.mxu0 0
    %1258 = vmatpush1.bf16.msra.mxu0 0
    %1259 = vmatprep.subr.bf16.mxu0 0
    %1260 = vmatpush1.bf16.msra.mxu0 0
    %1261 = vmatprep.subr.bf16.mxu0 0
    %1262 = vmatpush1.bf16.msra.mxu0 0
    %1263 = vmatprep.subr.bf16.mxu0 0
    %1264 = vmatpush1.bf16.msra.mxu0 0
    %1265 = vmatprep.subr.bf16.mxu0 0
    %1266 = vmatpush1.bf16.msra.mxu0 0
    %1267 = vmatprep.mubr.bf16.mxu0 0
    %1268 = vmatmul.mubr.bf16.gmra.mrb[0].mxu0 %v1233
    %v1269 = vpop.f32.mrb[0].mxu0
    %v1270 = vadd.f32 %v1200, %v1269
    %v1271 = vpop.f32.mrb[0].mxu0
    %v1272 = vpop.f32.mrb[0].mxu0
    %v1273 = vpop.f32.mrb[0].mxu0
    %1274 = vdwg.mxu0
    %v1275 = vpack.c.bf16 %v1270, %v1270
    %v1276 = vld [vmem:[%s7] sm:$0xf]
    %v1277 = vld [vmem:[%s7 + $0x4] sm:$0xf]
    %v1278 = vld [vmem:[%s7 + $0x8] sm:$0xf]
    %v1279 = vld [vmem:[%s7 + $0xc] sm:$0xf]
    %v1280 = vld [vmem:[%s7 + $0x10] sm:$0xf]
    %v1281 = vld [vmem:[%s7 + $0x14] sm:$0xf]
    %v1282 = vld [vmem:[%s7 + $0x18] sm:$0xf]
    %v1283 = vld [vmem:[%s7 + $0x1c] sm:$0xf]
    %v1284 = vld [vmem:[%s7 + $0x20] sm:$0xf]
    %v1285 = vld [vmem:[%s7 + $0x24] sm:$0xf]
    %v1286 = vld [vmem:[%s7 + $0x28] sm:$0xf]
    %v1287 = vld [vmem:[%s7 + $0x2c] sm:$0xf]
    %v1288 = vld [vmem:[%s7 + $0x30] sm:$0xf]
    %v1289 = vld [vmem:[%s7 + $0x34] sm:$0xf]
    %v1290 = vld [vmem:[%s7 + $0x38] sm:$0xf]
    %v1291 = vld [vmem:[%s7 + $0x3c] sm:$0xf]
    %v1292 = vlaneseq
    %v1293 = vshrl.u32 %v1292, 7
    %v1294 = vsub.s32 0, %v1293
    %v1295 = vrot.slane %v89, %v1294
    %v1312 = vunpack.c.l.b16 %v1276
    %v1313 = vunpack.c.l.b16 %v1277
    %v1314 = vunpack.c.l.b16 %v1278
    %v1315 = vunpack.c.l.b16 %v1279
    %v1316 = vunpack.c.l.b16 %v1280
    %v1317 = vunpack.c.l.b16 %v1281
    %v1318 = vunpack.c.l.b16 %v1282
    %v1319 = vunpack.c.l.b16 %v1283
    %v1320 = vunpack.c.l.b16 %v1284
    %v1321 = vunpack.c.l.b16 %v1285
    %v1322 = vunpack.c.l.b16 %v1286
    %v1323 = vunpack.c.l.b16 %v1287
    %v1324 = vunpack.c.l.b16 %v1288
    %v1325 = vunpack.c.l.b16 %v1289
    %v1326 = vunpack.c.l.b16 %v1290
    %v1327 = vunpack.c.l.b16 %v1291
    %v1328 = vpack.c.b16 %v1313, %v1312
    %v1329 = vpack.c.b16 %v1315, %v1314
    %v1330 = vpack.c.b16 %v1317, %v1316
    %v1331 = vpack.c.b16 %v1319, %v1318
    %v1332 = vpack.c.b16 %v1321, %v1320
    %v1333 = vpack.c.b16 %v1323, %v1322
    %v1334 = vpack.c.b16 %v1325, %v1324
    %v1335 = vpack.c.b16 %v1327, %v1326
    %1344 = vmatprep.subr.bf16.mxu0 0
    %1345 = vmatpush1.bf16.msra.mxu0 %v1328
    %1346 = vmatprep.subr.bf16.mxu0 0
    %1347 = vmatpush1.bf16.msra.mxu0 %v1329
    %1348 = vmatprep.subr.bf16.mxu0 0
    %1349 = vmatpush1.bf16.msra.mxu0 %v1330
    %1350 = vmatprep.subr.bf16.mxu0 0
    %1351 = vmatpush1.bf16.msra.mxu0 %v1331
    %1352 = vmatprep.subr.bf16.mxu0 0
    %1353 = vmatpush1.bf16.msra.mxu0 %v1332
    %1354 = vmatprep.subr.bf16.mxu0 0
    %1355 = vmatpush1.bf16.msra.mxu0 %v1333
    %1356 = vmatprep.subr.bf16.mxu0 0
    %1357 = vmatpush1.bf16.msra.mxu0 %v1334
    %1358 = vmatprep.subr.bf16.mxu0 0
    %1359 = vmatpush1.bf16.msra.mxu0 %v1335
    %1360 = vmatprep.subr.bf16.mxu0 0
    %1361 = vmatpush1.bf16.msra.mxu0 0
    %1362 = vmatprep.subr.bf16.mxu0 0
    %1363 = vmatpush1.bf16.msra.mxu0 0
    %1364 = vmatprep.subr.bf16.mxu0 0
    %1365 = vmatpush1.bf16.msra.mxu0 0
    %1366 = vmatprep.subr.bf16.mxu0 0
    %1367 = vmatpush1.bf16.msra.mxu0 0
    %1368 = vmatprep.subr.bf16.mxu0 0
    %1369 = vmatpush1.bf16.msra.mxu0 0
    %1370 = vmatprep.subr.bf16.mxu0 0
    %1371 = vmatpush1.bf16.msra.mxu0 0
    %1372 = vmatprep.subr.bf16.mxu0 0
    %1373 = vmatpush1.bf16.msra.mxu0 0
    %1374 = vmatprep.subr.bf16.mxu0 0
    %1375 = vmatpush1.bf16.msra.mxu0 0
    %1376 = vmatprep.mubr.bf16.mxu0 0
    %1377 = vmatmul.mubr.bf16.gmra.mrb[0].mxu0 %v1275
    %v1378 = vpop.f32.mrb[0].mxu0
    %v1379 = vadd.f32 %v1295, %v1378
    %v1380 = vpop.f32.mrb[0].mxu0
    %v1381 = vpop.f32.mrb[0].mxu0
    %v1382 = vpop.f32.mrb[0].mxu0
    %1383 = vdwg.mxu0
    %1384 = vst [vmem:[#allocation8] sm:$0x3] %v1379
    // Predicated region
    $region50: #{_lambda_.1} parent=1 // pred_check
      _
    $region51: #{_lambda_.1} parent=1 // pred_check_branch
      %1386 = sbr.rel (0) target = $region53
    $region52: #{_lambda_.1} parent=1 // pred_region
      %s1388 = ssub.s32 32, 32
      %1389 = vsyncadd [#allocation4], %s1388
      %s1391 = sshll.u32 [#allocation8], 4
      %s1392 = int_to_ptr.vmem [resolvable:$true] %s1391
      %1394 = dma.vmem_to_hbm [thread:$0]  %s1392, 32, %s9, [#allocation4]
    $region53: #{_lambda_.1} parent=1 // pred_fallthru
      _
    // Predicated region
    $region54: #{_lambda_.1} parent=1 // pred_check
      _
    $region55: #{_lambda_.1} parent=1 // pred_check_branch
      %1396 = sbr.rel (0) target = $region57
    $region56: #{_lambda_.1} parent=1 // pred_region
      %1397 = dma.done [#allocation4], 32
    $region57: #{_lambda_.1} parent=1 // pred_fallthru
      _
    %1398 = vsyncpa [#allocation3], 1
    %1399 = vsyncpa [#allocation6], 1
    %1400 = vsyncpa [#allocation4], 1

</llo_original>
